<compile_context>
chip_gen: v6e
topology: v6e:2x2x1
jax: 0.10.0
libtpu: 0.0.40
codegen_flags: <defaults>
</compile_context>

<pallas_src>
import functools

import jax
import jax.numpy as jnp
from jax.experimental import pallas as pl
from jax.experimental.pallas import tpu as pltpu


def _round_up(v, m):
    return -(-v // m) * m


def _vmem_capacity_bytes():
    try:
        return int(pltpu.get_tpu_info().vmem_capacity_bytes)
    except Exception:
        return 64 * 1024 * 1024   # conservative floor (v7x per-core VMEM)


# ----------------------------------------------------------------------------
# Kernels
# ----------------------------------------------------------------------------
def _cdc_im2col_kernel(x_ref, w_ref, b_ref, o_ref, *, K, TH, W_out, C_in,
                       C_out, KKC, KKC_p, stride, dilation, single_h_tile):
    """Small-C_in path: one im2col matmul per (batch, row-tile) grid point.

    x_ref : (1, Hp_p, Wp, C_in)   whole padded image (resident across h tiles)
    w_ref : (KKC_p, C_out)        folded CDC weights, contraction zero-padded
    b_ref : (1, C_out) f32        bias
    o_ref : (1, TH, W_out, C_out) output tile (no channel padding)
    """
    row_span = (TH - 1) * stride + (K - 1) * dilation + 1
    if single_h_tile:
        xv = x_ref[0]                                   # (Hp_p, Wp, C_in)
    else:
        h = pl.program_id(1)
        row0 = pl.multiple_of(h * (TH * stride), TH * stride)
        xv = x_ref[0, pl.ds(row0, row_span), :, :]      # (row_span, Wp, C_in)

    # im2col: K*K static (strided) slices -> one (TH*W_out, KKC_p) patch
    # matrix -> single MXU matmul with f32 accumulation.  The contraction is
    # zero-padded to KKC_p so the weight sublane dim is 8-aligned.
    taps = []
    for kh in range(K):
        for kw in range(K):
            h0 = kh * dilation
            w0 = kw * dilation
            sl = xv[h0:h0 + (TH - 1) * stride + 1:stride,
                    w0:w0 + (W_out - 1) * stride + 1:stride, :]
            taps.append(sl.reshape(TH * W_out, C_in))
    if KKC_p > KKC:
        taps.append(jnp.zeros((TH * W_out, KKC_p - KKC), dtype=taps[0].dtype))
    patches = jnp.concatenate(taps, axis=-1)            # (TH*W_out, KKC_p)

    acc = jnp.dot(patches, w_ref[...], preferred_element_type=jnp.float32)
    acc = acc + b_ref[...]                              # (1, C_out) broadcast
    # W_out is expected to be a multiple of 8 so this reshape is a free
    # sublane-aligned view.  TODO(synk): pad the W dim otherwise.
    o_ref[0] = acc.reshape(TH, W_out, C_out).astype(o_ref.dtype)


def _cdc_tap_kernel(x_ref, w_ref, b_ref, o_ref, acc_ref, *, K, TH, W_out,
                    C_in, C_out, stride, dilation, single_h_tile):
    """Large-C_in path: K*K per-tap matmuls accumulated in an f32 VMEM scratch
    (no im2col patch matrix -> per-tile VMEM stays ~1x the input tile).

    w_ref   : (K*K, C_in, C_out)
    acc_ref : VMEM (TH*W_out, C_out) f32 scratch
    """
    row_span = (TH - 1) * stride + (K - 1) * dilation + 1
    if single_h_tile:
        xv = x_ref[0]
    else:
        h = pl.program_id(1)
        row0 = pl.multiple_of(h * (TH * stride), TH * stride)
        xv = x_ref[0, pl.ds(row0, row_span), :, :]

    acc_ref[...] = jnp.broadcast_to(b_ref[...], acc_ref.shape)
    for kh in range(K):
        for kw in range(K):
            h0 = kh * dilation
            w0 = kw * dilation
            sl = xv[h0:h0 + (TH - 1) * stride + 1:stride,
                    w0:w0 + (W_out - 1) * stride + 1:stride, :]
            acc_ref[...] += jnp.dot(sl.reshape(TH * W_out, C_in),
                                    w_ref[kh * K + kw],
                                    preferred_element_type=jnp.float32)
    o_ref[0] = acc_ref[...].reshape(TH, W_out, C_out).astype(o_ref.dtype)


# ----------------------------------------------------------------------------
# Tiling / budgeting
# ----------------------------------------------------------------------------
def _pick_row_tile(h_out, w_out, budget, fixed, per_row):
    """Row tile: multiple of 8, MXU-friendly M (~512 rows), fits the VMEM budget.
    Non-divisible H_out is handled by the caller via row padding + crop."""
    if h_out <= 8:
        return h_out
    avail = budget - fixed
    th_cap = max((avail // max(per_row, 1)) // 8 * 8, 8)
    th_want = _round_up(max(512 // max(w_out, 1), 1), 8)
    th = min(_round_up(h_out, 8), th_cap, th_want)
    return max(th, 8)


# ----------------------------------------------------------------------------
# Wrapper
# ----------------------------------------------------------------------------
def cdc_forward(x_nchw, weight, bias=None, *, stride=1, padding=None,
                dilation=1, groups=1, compute_dtype=None):
    """CDC forward.  x_nchw: (N, C_in, H, W); weight: (C_out, C_in, K, K)."""
    assert groups == 1  # TODO(synk): grouped conv not implemented in this kernel
    if padding is None:
        padding = dilation

    C_out, C_in, K, _ = weight.shape
    N, _, H, W = x_nchw.shape

    # Fold validity: y and yc must share output size; yc's 1x1 tap must land on
    # one of y's KxK taps (true for the module default padding=dilation, K=3).
    H_out = (H + 2 * padding - dilation * (K - 1) - 1) // stride + 1
    W_out = (W + 2 * padding - dilation * (K - 1) - 1) // stride + 1
    assert H_out == (H - 1) // stride + 1 and W_out == (W - 1) // stride + 1, \
        "y / yc output sizes differ; CDC weight-fold not applicable"
    assert padding % dilation == 0 and 0 <= padding // dilation < K
    c = padding // dilation

    if compute_dtype is None:
        # One consistent operand dtype (avoids mixed bf16/f32 dot operands).
        # Pass compute_dtype=jnp.bfloat16 explicitly on v6e/v7x for peak MXU.
        compute_dtype = jnp.promote_types(x_nchw.dtype, weight.dtype)
    out_dtype = jnp.promote_types(x_nchw.dtype, weight.dtype)

    # --- fold the central-difference into the weights ------------------------
    w_sum = weight.sum(axis=(2, 3))                               # (C_out, C_in)
    w_cdc = weight.at[:, :, c, c].add(-w_sum)                     # (C_out,C_in,K,K)

    use_im2col = C_in < 128
    KKC = K * K * C_in
    if use_im2col:
        KKC_p = 128 if KKC <= 128 else _round_up(KKC, 8)
        w_k = jnp.transpose(w_cdc, (2, 3, 1, 0)).reshape(KKC, C_out)
        w_k = jnp.pad(w_k, ((0, KKC_p - KKC), (0, 0))).astype(compute_dtype)
        w_spec_shape = (KKC_p, C_out)
    else:
        KKC_p = KKC
        w_k = jnp.transpose(w_cdc, (2, 3, 1, 0)).reshape(K * K, C_in, C_out)
        w_k = w_k.astype(compute_dtype)
        w_spec_shape = (K * K, C_in, C_out)

    if bias is None:
        bias = jnp.zeros((C_out,), jnp.float32)
    b2 = bias.astype(jnp.float32).reshape(1, C_out)

    in_itemsize = jnp.dtype(compute_dtype).itemsize
    out_itemsize = jnp.dtype(out_dtype).itemsize
    w_bytes = w_k.size * in_itemsize
    b_bytes = C_out * 4

    # --- generation-aware VMEM budgeting & row-tile sizing --------------------
    vmem_cap = _vmem_capacity_bytes()            # 128 MiB v5e/v6e, 64 MiB v7x
    budget = int(vmem_cap * 0.85)

    Hp, Wp = H + 2 * padding, W + 2 * padding
    in_block = Hp * Wp * C_in * in_itemsize
    # If double-buffering the resident image would eat a big chunk of VMEM
    # (the v7x concern), single-buffer it (one exposed image DMA per batch).
    single_buffer_img = (2 * in_block > budget // 3)
    img_bufs_guess = 1 if single_buffer_img else 2

    if use_im2col:
        per_row = W_out * (KKC_p * in_itemsize        # im2col patches
                           + KKC * in_itemsize        # tap-slice temporaries
                           + C_out * 4                # f32 matmul result
                           + 2 * C_out * out_itemsize)  # double-buffered out
    else:
        per_row = W_out * (2 * C_in * in_itemsize     # current tap slice
                           + C_out * 4                # f32 VMEM accumulator
                           + 2 * C_out * out_itemsize)

    fixed = img_bufs_guess * in_block + 2 * (w_bytes + b_bytes) + (2 << 20)
    TH = _pick_row_tile(H_out, W_out, budget, fixed, per_row)
    n_h = -(-H_out // TH)
    H_out_p = n_h * TH
    single_h_tile = (n_h == 1)

    # --- NCHW -> NHWC, spatial zero-pad (+ bottom rows so the last row tile is
    # full; those garbage rows are cropped after the call) ---------------------
    # TODO(synk): keeping the surrounding model NHWC end-to-end would remove
    # these full-tensor relayout passes around the kernel.
    extra = (H_out_p - H_out) * stride
    x = jnp.transpose(x_nchw, (0, 2, 3, 1)).astype(compute_dtype)
    x = jnp.pad(x, ((0, 0), (padding, padding + extra),
                    (padding, padding), (0, 0)))
    Hp_p = Hp + extra

    use_single_buffer = single_buffer_img and n_h > 1
    img_bufs = 1 if use_single_buffer else 2
    vmem_need = (img_bufs * (Hp_p * Wp * C_in * in_itemsize)
                 + 2 * (w_bytes + b_bytes) + TH * per_row + (4 << 20))
    vmem_limit = int(min(vmem_cap, max(vmem_need, 32 * 1024 * 1024)))
    # TODO(synk): if the padded image itself exceeds the budget, switch the
    # input to memory_space=pl.ANY + manual per-row-tile halo DMA so input VMEM
    # scales with TH instead of Hp.

    # --- kernel / specs -------------------------------------------------------
    if use_im2col:
        kern = functools.partial(
            _cdc_im2col_kernel, K=K, TH=TH, W_out=W_out, C_in=C_in, C_out=C_out,
            KKC=KKC, KKC_p=KKC_p, stride=stride, dilation=dilation,
            single_h_tile=single_h_tile)
        scratch = []
    else:
        kern = functools.partial(
            _cdc_tap_kernel, K=K, TH=TH, W_out=W_out, C_in=C_in, C_out=C_out,
            stride=stride, dilation=dilation, single_h_tile=single_h_tile)
        scratch = [pltpu.VMEM((TH * W_out, C_out), jnp.float32)]

    img_kwargs = {}
    if use_single_buffer:
        img_kwargs["pipeline_mode"] = pl.Buffered(1)
    img_spec = pl.BlockSpec((1, Hp_p, Wp, C_in), lambda n, h: (n, 0, 0, 0),
                            **img_kwargs)

    cost = pl.CostEstimate(
        flops=2 * N * H_out_p * W_out * K * K * C_in * C_out,
        transcendentals=0,
        bytes_accessed=(N * Hp_p * Wp * C_in * in_itemsize
                        + w_k.size * in_itemsize
                        + N * H_out_p * W_out * C_out * out_itemsize))

    out_nhwc = pl.pallas_call(
        kern,
        out_shape=jax.ShapeDtypeStruct((N, H_out_p, W_out, C_out), out_dtype),
        grid_spec=pltpu.PrefetchScalarGridSpec(
            num_scalar_prefetch=0,
            grid=(N, n_h),
            in_specs=[
                img_spec,                                         # resident image
                pl.BlockSpec(w_spec_shape,
                             lambda n, h: (0,) * len(w_spec_shape)),
                pl.BlockSpec((1, C_out), lambda n, h: (0, 0)),
            ],
            out_specs=pl.BlockSpec((1, TH, W_out, C_out),
                                   lambda n, h: (n, h, 0, 0)),
            scratch_shapes=scratch),
        compiler_params=pltpu.CompilerParams(
            dimension_semantics=("parallel", "parallel"),
            vmem_limit_bytes=vmem_limit),
        cost_estimate=cost,
    )(x, w_k, b2)

    if H_out_p != H_out:
        out_nhwc = out_nhwc[:, :H_out]
    return jnp.transpose(out_nhwc, (0, 3, 1, 2))


# ----------------------------------------------------------------------------
# Pure-JAX reference mirroring the PyTorch module (two convs, subtract)
# ----------------------------------------------------------------------------
def cdc_reference(x_nchw, weight, bias=None, *, stride=1, padding=None,
                  dilation=1, groups=1):
    if padding is None:
        padding = dilation
    dn = ("NCHW", "OIHW", "NCHW")
    y = jax.lax.conv_general_dilated(
        x_nchw, weight, window_strides=(stride, stride),
        padding=((padding, padding), (padding, padding)),
        rhs_dilation=(dilation, dilation), dimension_numbers=dn,
        feature_group_count=groups, precision=jax.lax.Precision.HIGHEST)
    if bias is not None:
        y = y + bias.reshape(1, -1, 1, 1)
    w_c = weight.sum(axis=(2, 3), keepdims=True)
    yc = jax.lax.conv_general_dilated(
        x_nchw, w_c, window_strides=(stride, stride), padding=((0, 0), (0, 0)),
        dimension_numbers=dn, feature_group_count=groups,
        precision=jax.lax.Precision.HIGHEST)
    return y - yc


if __name__ == "__main__":
    key = jax.random.PRNGKey(0)
    k_x, k_w, k_b, k_x2 = jax.random.split(key, 4)

    # Case 1: module defaults (K=3, stride=1, padding=dilation=1), small shapes.
    N, C_in, H, W = 2, 4, 16, 16
    C_out, K = 8, 3
    x = jax.random.normal(k_x, (N, C_in, H, W), dtype=jnp.float32)
    weight = jax.random.normal(k_w, (C_out, C_in, K, K), dtype=jnp.float32)
    bias = jax.random.normal(k_b, (C_out,), dtype=jnp.float32)

    y = jax.block_until_ready(cdc_forward(x, weight, bias))
    y_ref = cdc_reference(x, weight, bias)
    assert y.shape == (N, C_out, H, W), y.shape
    assert jnp.allclose(y, y_ref, atol=1e-4, rtol=1e-4), float(
        jnp.max(jnp.abs(y - y_ref)))

    # Case 2: multi-row-tile path (dynamic h-tile slice + row pad/crop, H_out
    # not divisible by the row tile).
    x2 = jax.random.normal(k_x2, (1, C_in, 40, 32), dtype=jnp.float32)
    y2 = jax.block_until_ready(cdc_forward(x2, weight, bias))
    y2_ref = cdc_reference(x2, weight, bias)
    assert y2.shape == (1, C_out, 40, 32), y2.shape
    assert jnp.allclose(y2, y2_ref, atol=1e-4, rtol=1e-4), float(
        jnp.max(jnp.abs(y2 - y2_ref)))

    print("KERNEL_OK")
</pallas_src>

<mosaic_0001>
module attributes {stable_mosaic.version = 11 : i64} {
  func.func @_cdc_im2col_kernel(%arg0: i32, %arg1: i32, %arg2: memref<1x18x18x4xf32, #tpu.memory_space<vmem>>, %arg3: memref<128x8xf32, #tpu.memory_space<vmem>>, %arg4: memref<1x8xf32, #tpu.memory_space<vmem>>, %arg5: memref<1x16x16x8xf32, #tpu.memory_space<vmem>>) attributes {dimension_semantics = [#tpu.dimension_semantics<parallel>, #tpu.dimension_semantics<parallel>], iteration_bounds = array<i64: 2, 1>, scalar_prefetch = 0 : i64, scratch_operands = 0 : i64, tpu.core_type = #tpu.core_type<tc>, window_params = [{transform_indices = @transform_0, window_bounds = array<i64: 1, 18, 18, 4>}, {pipeline_mode = #tpu.pipeline_mode<synchronous>, transform_indices = @transform_1, window_bounds = array<i64: 128, 8>}, {pipeline_mode = #tpu.pipeline_mode<synchronous>, transform_indices = @transform_2, window_bounds = array<i64: 1, 8>}, {transform_indices = @transform_3, window_bounds = array<i64: 1, 16, 16, 8>}]} {
    %c0 = arith.constant 0 : index
    %c0_0 = arith.constant 0 : index
    %c0_1 = arith.constant 0 : index
    %c0_2 = arith.constant 0 : index
    %0 = vector.load %arg2[%c0, %c0_0, %c0_1, %c0_2] : memref<1x18x18x4xf32, #tpu.memory_space<vmem>>, vector<1x18x18x4xf32>
    %1 = vector.shape_cast %0 : vector<1x18x18x4xf32> to vector<18x18x4xf32>
    %2 = vector.extract_strided_slice %1 {offsets = [0, 0, 0], sizes = [16, 16, 4], strides = [1, 1, 1]} : vector<18x18x4xf32> to vector<16x16x4xf32>
    %3 = vector.shape_cast %2 : vector<16x16x4xf32> to vector<256x4xf32>
    %4 = vector.extract_strided_slice %1 {offsets = [0, 1, 0], sizes = [16, 16, 4], strides = [1, 1, 1]} : vector<18x18x4xf32> to vector<16x16x4xf32>
    %5 = vector.shape_cast %4 : vector<16x16x4xf32> to vector<256x4xf32>
    %6 = vector.extract_strided_slice %1 {offsets = [0, 2, 0], sizes = [16, 16, 4], strides = [1, 1, 1]} : vector<18x18x4xf32> to vector<16x16x4xf32>
    %7 = vector.shape_cast %6 : vector<16x16x4xf32> to vector<256x4xf32>
    %8 = vector.extract_strided_slice %1 {offsets = [1, 0, 0], sizes = [16, 16, 4], strides = [1, 1, 1]} : vector<18x18x4xf32> to vector<16x16x4xf32>
    %9 = vector.shape_cast %8 : vector<16x16x4xf32> to vector<256x4xf32>
    %10 = vector.extract_strided_slice %1 {offsets = [1, 1, 0], sizes = [16, 16, 4], strides = [1, 1, 1]} : vector<18x18x4xf32> to vector<16x16x4xf32>
    %11 = vector.shape_cast %10 : vector<16x16x4xf32> to vector<256x4xf32>
    %12 = vector.extract_strided_slice %1 {offsets = [1, 2, 0], sizes = [16, 16, 4], strides = [1, 1, 1]} : vector<18x18x4xf32> to vector<16x16x4xf32>
    %13 = vector.shape_cast %12 : vector<16x16x4xf32> to vector<256x4xf32>
    %14 = vector.extract_strided_slice %1 {offsets = [2, 0, 0], sizes = [16, 16, 4], strides = [1, 1, 1]} : vector<18x18x4xf32> to vector<16x16x4xf32>
    %15 = vector.shape_cast %14 : vector<16x16x4xf32> to vector<256x4xf32>
    %16 = vector.extract_strided_slice %1 {offsets = [2, 1, 0], sizes = [16, 16, 4], strides = [1, 1, 1]} : vector<18x18x4xf32> to vector<16x16x4xf32>
    %17 = vector.shape_cast %16 : vector<16x16x4xf32> to vector<256x4xf32>
    %18 = vector.extract_strided_slice %1 {offsets = [2, 2, 0], sizes = [16, 16, 4], strides = [1, 1, 1]} : vector<18x18x4xf32> to vector<16x16x4xf32>
    %19 = vector.shape_cast %18 : vector<16x16x4xf32> to vector<256x4xf32>
    %cst = arith.constant 0.000000e+00 : f32
    %20 = vector.broadcast %cst : f32 to vector<256x92xf32>
    %21 = tpu.concatenate %3, %5, %7, %9, %11, %13, %15, %17, %19, %20 in 1 : vector<256x4xf32>, vector<256x4xf32>, vector<256x4xf32>, vector<256x4xf32>, vector<256x4xf32>, vector<256x4xf32>, vector<256x4xf32>, vector<256x4xf32>, vector<256x4xf32>, vector<256x92xf32> -> vector<256x128xf32>
    %c0_3 = arith.constant 0 : index
    %c0_4 = arith.constant 0 : index
    %22 = vector.load %arg3[%c0_3, %c0_4] : memref<128x8xf32, #tpu.memory_space<vmem>>, vector<128x8xf32>
    %cst_5 = arith.constant dense<0.000000e+00> : vector<256x8xf32>
    %23 = tpu.matmul %21, %22, %cst_5 {dimension_numbers = #tpu.dot_dimension_numbers<[1], [0], [0], [1], [0, 0, 1, 1], [], []>} : vector<256x128xf32>, vector<128x8xf32>, vector<256x8xf32> -> vector<256x8xf32>
    %c0_6 = arith.constant 0 : index
    %c0_7 = arith.constant 0 : index
    %24 = vector.load %arg4[%c0_6, %c0_7] : memref<1x8xf32, #tpu.memory_space<vmem>>, vector<1x8xf32>
    %25 = vector.broadcast %24 : vector<1x8xf32> to vector<256x8xf32>
    %26 = arith.addf %23, %25 : vector<256x8xf32>
    %27 = vector.shape_cast %26 : vector<256x8xf32> to vector<16x16x8xf32>
    %c0_8 = arith.constant 0 : index
    %c0_9 = arith.constant 0 : index
    %c0_10 = arith.constant 0 : index
    %c0_11 = arith.constant 0 : index
    %28 = vector.load %arg5[%c0_8, %c0_9, %c0_10, %c0_11] : memref<1x16x16x8xf32, #tpu.memory_space<vmem>>, vector<1x16x16x8xf32>
    %29 = vector.shape_cast %28 : vector<1x16x16x8xf32> to vector<16x16x8xf32>
    %30 = vector.shape_cast %27 : vector<16x16x8xf32> to vector<1x16x16x8xf32>
    tpu.vector_store %arg5[%c0_8, %c0_9, %c0_10, %c0_11], %30 {strides = array<i32>} : memref<1x16x16x8xf32, #tpu.memory_space<vmem>>, vector<1x16x16x8xf32>,
    return
  }
  func.func @transform_0(%arg0: i32, %arg1: i32) -> (i32, i32, i32, i32) {
    %c0_i32 = arith.constant 0 : i32
    %c0_i32_0 = arith.constant 0 : i32
    %c0_i32_1 = arith.constant 0 : i32
    %c0_i32_2 = arith.constant 0 : i32
    return %arg0, %c0_i32, %c0_i32_0, %c0_i32_1 : i32, i32, i32, i32
  }
  func.func @transform_1(%arg0: i32, %arg1: i32) -> (i32, i32) {
    %c0_i32 = arith.constant 0 : i32
    %c0_i32_0 = arith.constant 0 : i32
    %c0_i32_1 = arith.constant 0 : i32
    return %c0_i32, %c0_i32_0 : i32, i32
  }
  func.func @transform_2(%arg0: i32, %arg1: i32) -> (i32, i32) {
    %c0_i32 = arith.constant 0 : i32
    %c0_i32_0 = arith.constant 0 : i32
    %c0_i32_1 = arith.constant 0 : i32
    return %c0_i32, %c0_i32_0 : i32, i32
  }
  func.func @transform_3(%arg0: i32, %arg1: i32) -> (i32, i32, i32, i32) {
    %c0_i32 = arith.constant 0 : i32
    %c0_i32_0 = arith.constant 0 : i32
    %c0_i32_1 = arith.constant 0 : i32
    return %arg0, %arg1, %c0_i32, %c0_i32_0 : i32, i32, i32, i32
  }
}

</mosaic_0001>

<llo_original>
// kernel: tpu_custom_call.1
$region0: #{tpu_custom_call.1}
  #allocation0 [shape = 'u32[]', space=smem, size = 0x4, offset = 0x4, fixed_abs, tag = 'smem constant byte address 0x4 - core index']
  #allocation1 [shape = 'u32[144,128]{1,0:T(1,128)}', space=vmem, size = 0x12000, scoped, tag = 'internal scratch']
  %s0 = inlined_call_operand.vmem [shape: f32[2,18,18,4], index: 0, kind: input, shape index: {}]
  %s1 = inlined_call_operand.vmem [shape: f32[128,8], index: 1, kind: input, shape index: {}]
  %s2 = inlined_call_operand.vmem [shape: f32[1,8], index: 2, kind: input, shape index: {}]
  %s3 = inlined_call_operand.vmem [shape: f32[2,16,16,8], index: 3, kind: output, shape index: {}]
  %s4 = sld [smem:[#allocation0]]
  $region45: #{tpu_custom_call.1} parent=0
    _
  %s6 = ssub.s32 1, %s4
  %s7 = scalar_select 0, %s6, %s4
  loop: start=0, step=1, limit=4
  $region2: #{tpu_custom_call.1} parent=0 // loop_pre_header
    _
  $region3: #{tpu_custom_call.1} parent=0 // loop_header
    %s9 = sphi 0, %s13
    %p10 = scmp.ge.s32.totalorder %s9, 4
    %s16 = sphi 0, %s28
    %s17 = sphi 0, %s24
    %s18 = sphi 0, %s16
    %s19 = sphi 0, %s17
    %s20 = sphi 0, %s18
    %s21 = sphi 0, %s19
    %s31 = sphi 0, %s33
    %s34 = sphi 0, %s31
    %s35 = sphi 0, %s34
    %s51 = sphi 0, %s35
    %s55 = sphi 0, %s55
    %s57 = sphi 0, %s55
    %s58 = sphi 0, %s57
    %s72 = sphi 0, %s58
    %s76 = sphi 0, %s76
    %s78 = sphi 0, %s76
    %s79 = sphi 0, %s78
    %s93 = sphi 0, %s79
    %s101 = sphi 0, %s103
    %s104 = sphi 0, %s101
    %s105 = sphi 0, %s104
    %s121 = sphi 0, %s105
  $region4: #{tpu_custom_call.1} parent=0 // loop_header_branch
    %12 = sbr.rel (%p10) target = $region8
  $region5: #{tpu_custom_call.1} parent=0 // loop_body
    %s14 = ssub.s32 %s9, 1
    %s15 = ssub.s32 %s9, 2
    %s22 = sadd.s32 1, %s17
    %p23 = scmp.ge.s32.totalorder %s22, 1
    %s24 = scalar_select %p23, 0, %s22
    %s25 = sadd.s32 1, %s16
    %s26 = scalar_select %p23, %s25, %s16
    %p27 = scmp.ge.s32.totalorder %s26, 2
    %s28 = scalar_select %p27, 0, %s26
    %s29 = ssub.s32 %s16, %s28
    %p30 = scmp.eq.s32.totalorder %s29, 0
    %s32 = sadd.s32 %s31, 1
    %s33 = scalar_select %p30, %s31, %s32
    %p36 = pneg %p30
    %p37 = scmp.eq.s32.totalorder %s9, 1
    %p38 = por %p36, %p37
    %p39 = scmp.ne.s32.totalorder %s31, %s34
    %p40 = scmp.eq.s32.totalorder %s9, 0
    %p41 = por %p39, %p40
    %p42 = scmp.ne.s32.totalorder %s31, %s34
    %p43 = scmp.eq.s32.totalorder %s14, 1
    %p44 = por %p42, %p43
    %p45 = scmp.ne.s32.totalorder %s34, %s35
    %p46 = scmp.eq.s32.totalorder %s14, 0
    %p47 = por %p45, %p46
    %p48 = scmp.ne.s32.totalorder %s34, %s35
    %p49 = scmp.eq.s32.totalorder %s15, 1
    %p50 = por %p48, %p49
    %p52 = scmp.ne.s32.totalorder %s35, %s51
    %p53 = scmp.eq.s32.totalorder %s15, 0
    %p54 = por %p52, %p53
    %s56 = sadd.s32 %s55, 1
    %p59 = scmp.eq.s32.totalorder %s9, 1
    %p60 = scmp.ne.s32.totalorder %s55, %s57
    %p61 = scmp.eq.s32.totalorder %s9, 0
    %p62 = por %p60, %p61
    %p63 = scmp.ne.s32.totalorder %s55, %s57
    %p64 = scmp.eq.s32.totalorder %s14, 1
    %p65 = por %p63, %p64
    %p66 = scmp.ne.s32.totalorder %s57, %s58
    %p67 = scmp.eq.s32.totalorder %s14, 0
    %p68 = por %p66, %p67
    %p69 = scmp.ne.s32.totalorder %s57, %s58
    %p70 = scmp.eq.s32.totalorder %s15, 1
    %p71 = por %p69, %p70
    %p73 = scmp.ne.s32.totalorder %s58, %s72
    %p74 = scmp.eq.s32.totalorder %s15, 0
    %p75 = por %p73, %p74
    %s77 = sadd.s32 %s76, 1
    %p80 = scmp.eq.s32.totalorder %s9, 1
    %p81 = scmp.ne.s32.totalorder %s76, %s78
    %p82 = scmp.eq.s32.totalorder %s9, 0
    %p83 = por %p81, %p82
    %p84 = scmp.ne.s32.totalorder %s76, %s78
    %p85 = scmp.eq.s32.totalorder %s14, 1
    %p86 = por %p84, %p85
    %p87 = scmp.ne.s32.totalorder %s78, %s79
    %p88 = scmp.eq.s32.totalorder %s14, 0
    %p89 = por %p87, %p88
    %p90 = scmp.ne.s32.totalorder %s78, %s79
    %p91 = scmp.eq.s32.totalorder %s15, 1
    %p92 = por %p90, %p91
    %p94 = scmp.ne.s32.totalorder %s79, %s93
    %p95 = scmp.eq.s32.totalorder %s15, 0
    %p96 = por %p94, %p95
    %s97 = ssub.s32 %s16, %s28
    %s98 = ssub.s32 %s17, %s24
    %s99 = sor.u32 %s97, %s98
    %p100 = scmp.eq.s32.totalorder %s99, 0
    %s102 = sadd.s32 %s101, 1
    %s103 = scalar_select %p100, %s101, %s102
    %p106 = pneg %p100
    %p107 = scmp.eq.s32.totalorder %s9, 1
    %p108 = por %p106, %p107
    %p109 = scmp.ne.s32.totalorder %s101, %s104
    %p110 = scmp.eq.s32.totalorder %s9, 0
    %p111 = por %p109, %p110
    %p112 = scmp.ne.s32.totalorder %s101, %s104
    %p113 = scmp.eq.s32.totalorder %s14, 1
    %p114 = por %p112, %p113
    %p115 = scmp.ne.s32.totalorder %s104, %s105
    %p116 = scmp.eq.s32.totalorder %s14, 0
    %p117 = por %p115, %p116
    %p118 = scmp.ne.s32.totalorder %s104, %s105
    %p119 = scmp.eq.s32.totalorder %s15, 1
    %p120 = por %p118, %p119
    %p122 = scmp.ne.s32.totalorder %s105, %s121
    %p123 = scmp.eq.s32.totalorder %s15, 0
    %p124 = por %p122, %p123
    %p125 = scmp.le.s32.totalorder 1, %s9
    %p126 = scmp.lt.s32.totalorder %s9, 3
    %p127 = pnand %p125, %p126
    %p128 = pneg %p127
    // Predicated region
    $region9: #{tpu_custom_call.1} parent=5 // pred_check
      _
    $region10: #{tpu_custom_call.1} parent=5 // pred_check_branch
      %130 = sbr.rel (%p127) target = $region12
    $region11: #{tpu_custom_call.1} parent=5 // pred_region
      %s131 = ssub.s32 %s9, 1
      // Predicated region
      $region13: #{tpu_custom_call.1} parent=11 // pred_check
        %p132 = pneg %p68
      $region14: #{tpu_custom_call.1} parent=11 // pred_check_branch
        %134 = sbr.rel (%p132) target = $region16
      $region15: #{tpu_custom_call.1} parent=11 // pred_region
        _
      $region16: #{tpu_custom_call.1} parent=11 // pred_fallthru
        _
      // Predicated region
      $region17: #{tpu_custom_call.1} parent=11 // pred_check
        %p135 = pneg %p89
      $region18: #{tpu_custom_call.1} parent=11 // pred_check_branch
        %137 = sbr.rel (%p135) target = $region20
      $region19: #{tpu_custom_call.1} parent=11 // pred_region
        _
      $region20: #{tpu_custom_call.1} parent=11 // pred_fallthru
        _
    $region12: #{tpu_custom_call.1} parent=5 // pred_fallthru
      _
    %p138 = scmp.lt.s32.totalorder %s9, 2
    // Predicated region
    $region21: #{tpu_custom_call.1} parent=5 // pred_check
      %p139 = pneg %p138
    $region22: #{tpu_custom_call.1} parent=5 // pred_check_branch
      %141 = sbr.rel (%p139) target = $region24
    $region23: #{tpu_custom_call.1} parent=5 // pred_region
      // Predicated region
      $region25: #{tpu_custom_call.1} parent=23 // pred_check
        %p142 = pneg %p41
      $region26: #{tpu_custom_call.1} parent=23 // pred_check_branch
        %144 = sbr.rel (%p142) target = $region28
      $region27: #{tpu_custom_call.1} parent=23 // pred_region
        %p145 = scmp.lt.s32.totalorder %s16, 1
        %s146 = scalar_select %p145, %s16, 1
        %s147 = smul.addr %s146, 54
        %s148 = smul.addr %s147, 8
        %s149 = scalar_lea.vmem %s0, %s148
      $region28: #{tpu_custom_call.1} parent=23 // pred_fallthru
        _
    $region24: #{tpu_custom_call.1} parent=5 // pred_fallthru
      _
    %p150 = scmp.le.s32.totalorder 1, %s9
    %p151 = scmp.lt.s32.totalorder %s9, 3
    %p152 = pnand %p150, %p151
    %p153 = pneg %p152
    // Predicated region
    $region29: #{tpu_custom_call.1} parent=5 // pred_check
      _
    $region30: #{tpu_custom_call.1} parent=5 // pred_check_branch
      %155 = sbr.rel (%p152) target = $region32
    $region31: #{tpu_custom_call.1} parent=5 // pred_region
      %s156 = ssub.s32 %s9, 1
      %p157 = scmp.lt.s32.totalorder %s18, 1
      %s158 = scalar_select %p157, %s18, 1
      %s159 = smul.addr %s158, 54
      %s160 = smul.addr %s159, 8
      %s161 = scalar_lea.vmem %s0, %s160
      %p162 = pneg %p47
      %p163 = pneg %p44
      %p164 = pneg %p68
      %p165 = pneg %p65
      %p166 = pneg %p89
      %p167 = pneg %p86
      %p168 = pneg %p117
      %p169 = pneg %p114
      %s170 = smul.u32 16, %s19
      %p171 = scmp.lt.s32.totalorder %s18, 1
      %s172 = scalar_select %p171, %s18, 1
      %p173 = scmp.lt.s32.totalorder %s170, 15
      %s174 = scalar_select %p173, %s170, 15
      %s175 = smul.addr %s174, 2
      %s176 = smul.addr %s172, 32
      %s177 = sadd.s32 %s175, %s176
      %s178 = smul.addr %s177, 8
      %s179 = scalar_lea.vmem %s3, %s178
      %p180 = scmp.lt.s32.totalorder %s18, 1
      %s181 = scalar_select %p180, %s18, 1
      %s182 = smul.addr %s181, 54
      %s183 = smul.addr %s182, 8
      %s184 = scalar_lea.vmem %s0, %s183
      %s185 = smul.u32 16, %s19
      %p186 = scmp.lt.s32.totalorder %s18, 1
      %s187 = scalar_select %p186, %s18, 1
      %p188 = scmp.lt.s32.totalorder %s185, 15
      %s189 = scalar_select %p188, %s185, 15
      %s190 = smul.addr %s189, 2
      %s191 = smul.addr %s187, 32
      %s192 = sadd.s32 %s190, %s191
      %s193 = smul.addr %s192, 8
      %s194 = scalar_lea.vmem %s3, %s193
      %s195 = smul.u32 16, %s19
      %v196 = vld [vmem:[%s184] sm:$0xff]
      %v197 = vld [vmem:[%s184 + $0x8] sm:$0xff]
      %v198 = vld [vmem:[%s184 + $0x10] sm:$0x3]
      %v199 = vld [vmem:[%s184 + $0x18] sm:$0xff]
      %v200 = vld [vmem:[%s184 + $0x20] sm:$0xff]
      %v201 = vld [vmem:[%s184 + $0x28] sm:$0x3]
      %v202 = vld [vmem:[%s184 + $0x30] sm:$0xff]
      %v203 = vld [vmem:[%s184 + $0x38] sm:$0xff]
      %v204 = vld [vmem:[%s184 + $0x40] sm:$0x3]
      %v205 = vld [vmem:[%s184 + $0x48] sm:$0xff]
      %v206 = vld [vmem:[%s184 + $0x50] sm:$0xff]
      %v207 = vld [vmem:[%s184 + $0x58] sm:$0x3]
      %v208 = vld [vmem:[%s184 + $0x60] sm:$0xff]
      %v209 = vld [vmem:[%s184 + $0x68] sm:$0xff]
      %v210 = vld [vmem:[%s184 + $0x70] sm:$0x3]
      %v211 = vld [vmem:[%s184 + $0x78] sm:$0xff]
      %v212 = vld [vmem:[%s184 + $0x80] sm:$0xff]
      %v213 = vld [vmem:[%s184 + $0x88] sm:$0x3]
      %v214 = vld [vmem:[%s184 + $0x90] sm:$0xff]
      %v215 = vld [vmem:[%s184 + $0x98] sm:$0xff]
      %v216 = vld [vmem:[%s184 + $0xa0] sm:$0x3]
      %v217 = vld [vmem:[%s184 + $0xa8] sm:$0xff]
      %v218 = vld [vmem:[%s184 + $0xb0] sm:$0xff]
      %v219 = vld [vmem:[%s184 + $0xb8] sm:$0x3]
      %v220 = vld [vmem:[%s184 + $0xc0] sm:$0xff]
      %v221 = vld [vmem:[%s184 + $0xc8] sm:$0xff]
      %v222 = vld [vmem:[%s184 + $0xd0] sm:$0x3]
      %v223 = vld [vmem:[%s184 + $0xd8] sm:$0xff]
      %v224 = vld [vmem:[%s184 + $0xe0] sm:$0xff]
      %v225 = vld [vmem:[%s184 + $0xe8] sm:$0x3]
      %v226 = vld [vmem:[%s184 + $0xf0] sm:$0xff]
      %v227 = vld [vmem:[%s184 + $0xf8] sm:$0xff]
      %v228 = vld [vmem:[%s184 + $0x100] sm:$0x3]
      %v229 = vld [vmem:[%s184 + $0x108] sm:$0xff]
      %v230 = vld [vmem:[%s184 + $0x110] sm:$0xff]
      %v231 = vld [vmem:[%s184 + $0x118] sm:$0x3]
      %v232 = vld [vmem:[%s184 + $0x120] sm:$0xff]
      %v233 = vld [vmem:[%s184 + $0x128] sm:$0xff]
      %v234 = vld [vmem:[%s184 + $0x130] sm:$0x3]
      %v235 = vld [vmem:[%s184 + $0x138] sm:$0xff]
      %v236 = vld [vmem:[%s184 + $0x140] sm:$0xff]
      %v237 = vld [vmem:[%s184 + $0x148] sm:$0x3]
      %v238 = vld [vmem:[%s184 + $0x150] sm:$0xff]
      %v239 = vld [vmem:[%s184 + $0x158] sm:$0xff]
      %v240 = vld [vmem:[%s184 + $0x160] sm:$0x3]
      %v241 = vld [vmem:[%s184 + $0x168] sm:$0xff]
      %v242 = vld [vmem:[%s184 + $0x170] sm:$0xff]
      %v243 = vld [vmem:[%s184 + $0x178] sm:$0x3]
      %v244 = vld [vmem:[%s184 + $0x180] sm:$0xff]
      %v245 = vld [vmem:[%s184 + $0x188] sm:$0xff]
      %v246 = vld [vmem:[%s184 + $0x190] sm:$0x3]
      %v247 = vld [vmem:[%s184 + $0x198] sm:$0xff]
      %v248 = vld [vmem:[%s184 + $0x1a0] sm:$0xff]
      %v249 = vld [vmem:[%s184 + $0x1a8] sm:$0x3]
      %vm298 = vcmask 1046528
      %v299 = vrot.slane %v196, 1
      %v300 = vrot.slane %v197, 1
      %v301 = vsel %vm298, %v299, %v300
      %v302 = vrot.slane %v198, 1
      %v303 = vsel %vm298, %v300, %v302
      %v304 = vrot.slane %v199, 1
      %v305 = vrot.slane %v200, 1
      %v306 = vsel %vm298, %v304, %v305
      %v307 = vrot.slane %v201, 1
      %v308 = vsel %vm298, %v305, %v307
      %v309 = vrot.slane %v202, 1
      %v310 = vrot.slane %v203, 1
      %v311 = vsel %vm298, %v309, %v310
      %v312 = vrot.slane %v204, 1
      %v313 = vsel %vm298, %v310, %v312
      %v314 = vrot.slane %v205, 1
      %v315 = vrot.slane %v206, 1
      %v316 = vsel %vm298, %v314, %v315
      %v317 = vrot.slane %v207, 1
      %v318 = vsel %vm298, %v315, %v317
      %v319 = vrot.slane %v208, 1
      %v320 = vrot.slane %v209, 1
      %v321 = vsel %vm298, %v319, %v320
      %v322 = vrot.slane %v210, 1
      %v323 = vsel %vm298, %v320, %v322
      %v324 = vrot.slane %v211, 1
      %v325 = vrot.slane %v212, 1
      %v326 = vsel %vm298, %v324, %v325
      %v327 = vrot.slane %v213, 1
      %v328 = vsel %vm298, %v325, %v327
      %v329 = vrot.slane %v214, 1
      %v330 = vrot.slane %v215, 1
      %v331 = vsel %vm298, %v329, %v330
      %v332 = vrot.slane %v216, 1
      %v333 = vsel %vm298, %v330, %v332
      %v334 = vrot.slane %v217, 1
      %v335 = vrot.slane %v218, 1
      %v336 = vsel %vm298, %v334, %v335
      %v337 = vrot.slane %v219, 1
      %v338 = vsel %vm298, %v335, %v337
      %v339 = vrot.slane %v220, 1
      %v340 = vrot.slane %v221, 1
      %v341 = vsel %vm298, %v339, %v340
      %v342 = vrot.slane %v222, 1
      %v343 = vsel %vm298, %v340, %v342
      %v344 = vrot.slane %v223, 1
      %v345 = vrot.slane %v224, 1
      %v346 = vsel %vm298, %v344, %v345
      %v347 = vrot.slane %v225, 1
      %v348 = vsel %vm298, %v345, %v347
      %v349 = vrot.slane %v226, 1
      %v350 = vrot.slane %v227, 1
      %v351 = vsel %vm298, %v349, %v350
      %v352 = vrot.slane %v228, 1
      %v353 = vsel %vm298, %v350, %v352
      %v354 = vrot.slane %v229, 1
      %v355 = vrot.slane %v230, 1
      %v356 = vsel %vm298, %v354, %v355
      %v357 = vrot.slane %v231, 1
      %v358 = vsel %vm298, %v355, %v357
      %v359 = vrot.slane %v232, 1
      %v360 = vrot.slane %v233, 1
      %v361 = vsel %vm298, %v359, %v360
      %v362 = vrot.slane %v234, 1
      %v363 = vsel %vm298, %v360, %v362
      %v364 = vrot.slane %v235, 1
      %v365 = vrot.slane %v236, 1
      %v366 = vsel %vm298, %v364, %v365
      %v367 = vrot.slane %v237, 1
      %v368 = vsel %vm298, %v365, %v367
      %v369 = vrot.slane %v238, 1
      %v370 = vrot.slane %v239, 1
      %v371 = vsel %vm298, %v369, %v370
      %v372 = vrot.slane %v240, 1
      %v373 = vsel %vm298, %v370, %v372
      %v374 = vrot.slane %v241, 1
      %v375 = vrot.slane %v242, 1
      %v376 = vsel %vm298, %v374, %v375
      %v377 = vrot.slane %v243, 1
      %v378 = vsel %vm298, %v375, %v377
      %vm379 = vcmask 1045504
      %v380 = vrot.slane %v196, 2
      %v381 = vrot.slane %v197, 2
      %v382 = vsel %vm379, %v380, %v381
      %v383 = vrot.slane %v198, 2
      %v384 = vsel %vm379, %v381, %v383
      %v385 = vrot.slane %v199, 2
      %v386 = vrot.slane %v200, 2
      %v387 = vsel %vm379, %v385, %v386
      %v388 = vrot.slane %v201, 2
      %v389 = vsel %vm379, %v386, %v388
      %v390 = vrot.slane %v202, 2
      %v391 = vrot.slane %v203, 2
      %v392 = vsel %vm379, %v390, %v391
      %v393 = vrot.slane %v204, 2
      %v394 = vsel %vm379, %v391, %v393
      %v395 = vrot.slane %v205, 2
      %v396 = vrot.slane %v206, 2
      %v397 = vsel %vm379, %v395, %v396
      %v398 = vrot.slane %v207, 2
      %v399 = vsel %vm379, %v396, %v398
      %v400 = vrot.slane %v208, 2
      %v401 = vrot.slane %v209, 2
      %v402 = vsel %vm379, %v400, %v401
      %v403 = vrot.slane %v210, 2
      %v404 = vsel %vm379, %v401, %v403
      %v405 = vrot.slane %v211, 2
      %v406 = vrot.slane %v212, 2
      %v407 = vsel %vm379, %v405, %v406
      %v408 = vrot.slane %v213, 2
      %v409 = vsel %vm379, %v406, %v408
      %v410 = vrot.slane %v214, 2
      %v411 = vrot.slane %v215, 2
      %v412 = vsel %vm379, %v410, %v411
      %v413 = vrot.slane %v216, 2
      %v414 = vsel %vm379, %v411, %v413
      %v415 = vrot.slane %v217, 2
      %v416 = vrot.slane %v218, 2
      %v417 = vsel %vm379, %v415, %v416
      %v418 = vrot.slane %v219, 2
      %v419 = vsel %vm379, %v416, %v418
      %v420 = vrot.slane %v220, 2
      %v421 = vrot.slane %v221, 2
      %v422 = vsel %vm379, %v420, %v421
      %v423 = vrot.slane %v222, 2
      %v424 = vsel %vm379, %v421, %v423
      %v425 = vrot.slane %v223, 2
      %v426 = vrot.slane %v224, 2
      %v427 = vsel %vm379, %v425, %v426
      %v428 = vrot.slane %v225, 2
      %v429 = vsel %vm379, %v426, %v428
      %v430 = vrot.slane %v226, 2
      %v431 = vrot.slane %v227, 2
      %v432 = vsel %vm379, %v430, %v431
      %v433 = vrot.slane %v228, 2
      %v434 = vsel %vm379, %v431, %v433
      %v435 = vrot.slane %v229, 2
      %v436 = vrot.slane %v230, 2
      %v437 = vsel %vm379, %v435, %v436
      %v438 = vrot.slane %v231, 2
      %v439 = vsel %vm379, %v436, %v438
      %v440 = vrot.slane %v232, 2
      %v441 = vrot.slane %v233, 2
      %v442 = vsel %vm379, %v440, %v441
      %v443 = vrot.slane %v234, 2
      %v444 = vsel %vm379, %v441, %v443
      %v445 = vrot.slane %v235, 2
      %v446 = vrot.slane %v236, 2
      %v447 = vsel %vm379, %v445, %v446
      %v448 = vrot.slane %v237, 2
      %v449 = vsel %vm379, %v446, %v448
      %v450 = vrot.slane %v238, 2
      %v451 = vrot.slane %v239, 2
      %v452 = vsel %vm379, %v450, %v451
      %v453 = vrot.slane %v240, 2
      %v454 = vsel %vm379, %v451, %v453
      %v455 = vrot.slane %v241, 2
      %v456 = vrot.slane %v242, 2
      %v457 = vsel %vm379, %v455, %v456
      %v458 = vrot.slane %v243, 2
      %v459 = vsel %vm379, %v456, %v458
      %v463 = vrot.slane %v244, 1
      %v464 = vrot.slane %v245, 1
      %v465 = vsel %vm298, %v463, %v464
      %v466 = vrot.slane %v246, 1
      %v467 = vsel %vm298, %v464, %v466
      %v468 = vrot.slane %v244, 2
      %v469 = vrot.slane %v245, 2
      %v470 = vsel %vm379, %v468, %v469
      %v471 = vrot.slane %v246, 2
      %v472 = vsel %vm379, %v469, %v471
      %v476 = vrot.slane %v247, 1
      %v477 = vrot.slane %v248, 1
      %v478 = vsel %vm298, %v476, %v477
      %v479 = vrot.slane %v249, 1
      %v480 = vsel %vm298, %v477, %v479
      %v481 = vrot.slane %v247, 2
      %v482 = vrot.slane %v248, 2
      %v483 = vsel %vm379, %v481, %v482
      %v484 = vrot.slane %v249, 2
      %v485 = vsel %vm379, %v482, %v484
      %486 = vrot.lane.b32.xlu0 %v301, 4
      %v487 = vpop.permute.xlu0 %486
      %488 = vrot.lane.b32.xlu0 %v303, 4
      %v489 = vpop.permute.xlu0 %488
      %490 = vrot.lane.b32.xlu0 %v306, 4
      %v491 = vpop.permute.xlu0 %490
      %492 = vrot.lane.b32.xlu0 %v308, 4
      %v493 = vpop.permute.xlu0 %492
      %494 = vrot.lane.b32.xlu0 %v311, 4
      %v495 = vpop.permute.xlu0 %494
      %496 = vrot.lane.b32.xlu0 %v313, 4
      %v497 = vpop.permute.xlu0 %496
      %498 = vrot.lane.b32.xlu0 %v316, 4
      %v499 = vpop.permute.xlu0 %498
      %500 = vrot.lane.b32.xlu0 %v318, 4
      %v501 = vpop.permute.xlu0 %500
      %502 = vrot.lane.b32.xlu0 %v321, 4
      %v503 = vpop.permute.xlu0 %502
      %504 = vrot.lane.b32.xlu0 %v323, 4
      %v505 = vpop.permute.xlu0 %504
      %506 = vrot.lane.b32.xlu0 %v326, 4
      %v507 = vpop.permute.xlu0 %506
      %508 = vrot.lane.b32.xlu0 %v328, 4
      %v509 = vpop.permute.xlu0 %508
      %510 = vrot.lane.b32.xlu0 %v331, 4
      %v511 = vpop.permute.xlu0 %510
      %512 = vrot.lane.b32.xlu0 %v333, 4
      %v513 = vpop.permute.xlu0 %512
      %514 = vrot.lane.b32.xlu0 %v336, 4
      %v515 = vpop.permute.xlu0 %514
      %516 = vrot.lane.b32.xlu0 %v338, 4
      %v517 = vpop.permute.xlu0 %516
      %518 = vrot.lane.b32.xlu0 %v341, 4
      %v519 = vpop.permute.xlu0 %518
      %520 = vrot.lane.b32.xlu0 %v343, 4
      %v521 = vpop.permute.xlu0 %520
      %522 = vrot.lane.b32.xlu0 %v346, 4
      %v523 = vpop.permute.xlu0 %522
      %524 = vrot.lane.b32.xlu0 %v348, 4
      %v525 = vpop.permute.xlu0 %524
      %526 = vrot.lane.b32.xlu0 %v351, 4
      %v527 = vpop.permute.xlu0 %526
      %528 = vrot.lane.b32.xlu0 %v353, 4
      %v529 = vpop.permute.xlu0 %528
      %530 = vrot.lane.b32.xlu0 %v356, 4
      %v531 = vpop.permute.xlu0 %530
      %532 = vrot.lane.b32.xlu0 %v358, 4
      %v533 = vpop.permute.xlu0 %532
      %534 = vrot.lane.b32.xlu0 %v361, 4
      %v535 = vpop.permute.xlu0 %534
      %536 = vrot.lane.b32.xlu0 %v363, 4
      %v537 = vpop.permute.xlu0 %536
      %538 = vrot.lane.b32.xlu0 %v366, 4
      %v539 = vpop.permute.xlu0 %538
      %540 = vrot.lane.b32.xlu0 %v368, 4
      %v541 = vpop.permute.xlu0 %540
      %542 = vrot.lane.b32.xlu0 %v371, 4
      %v543 = vpop.permute.xlu0 %542
      %544 = vrot.lane.b32.xlu0 %v373, 4
      %v545 = vpop.permute.xlu0 %544
      %546 = vrot.lane.b32.xlu0 %v376, 4
      %v547 = vpop.permute.xlu0 %546
      %548 = vrot.lane.b32.xlu0 %v378, 4
      %v549 = vpop.permute.xlu0 %548
      %582 = vrot.lane.b32.xlu0 %v382, 8
      %v583 = vpop.permute.xlu0 %582
      %584 = vrot.lane.b32.xlu0 %v384, 8
      %v585 = vpop.permute.xlu0 %584
      %586 = vrot.lane.b32.xlu0 %v387, 8
      %v587 = vpop.permute.xlu0 %586
      %588 = vrot.lane.b32.xlu0 %v389, 8
      %v589 = vpop.permute.xlu0 %588
      %590 = vrot.lane.b32.xlu0 %v392, 8
      %v591 = vpop.permute.xlu0 %590
      %592 = vrot.lane.b32.xlu0 %v394, 8
      %v593 = vpop.permute.xlu0 %592
      %594 = vrot.lane.b32.xlu0 %v397, 8
      %v595 = vpop.permute.xlu0 %594
      %596 = vrot.lane.b32.xlu0 %v399, 8
      %v597 = vpop.permute.xlu0 %596
      %598 = vrot.lane.b32.xlu0 %v402, 8
      %v599 = vpop.permute.xlu0 %598
      %600 = vrot.lane.b32.xlu0 %v404, 8
      %v601 = vpop.permute.xlu0 %600
      %602 = vrot.lane.b32.xlu0 %v407, 8
      %v603 = vpop.permute.xlu0 %602
      %604 = vrot.lane.b32.xlu0 %v409, 8
      %v605 = vpop.permute.xlu0 %604
      %606 = vrot.lane.b32.xlu0 %v412, 8
      %v607 = vpop.permute.xlu0 %606
      %608 = vrot.lane.b32.xlu0 %v414, 8
      %v609 = vpop.permute.xlu0 %608
      %610 = vrot.lane.b32.xlu0 %v417, 8
      %v611 = vpop.permute.xlu0 %610
      %612 = vrot.lane.b32.xlu0 %v419, 8
      %v613 = vpop.permute.xlu0 %612
      %614 = vrot.lane.b32.xlu0 %v422, 8
      %v615 = vpop.permute.xlu0 %614
      %616 = vrot.lane.b32.xlu0 %v424, 8
      %v617 = vpop.permute.xlu0 %616
      %618 = vrot.lane.b32.xlu0 %v427, 8
      %v619 = vpop.permute.xlu0 %618
      %620 = vrot.lane.b32.xlu0 %v429, 8
      %v621 = vpop.permute.xlu0 %620
      %622 = vrot.lane.b32.xlu0 %v432, 8
      %v623 = vpop.permute.xlu0 %622
      %624 = vrot.lane.b32.xlu0 %v434, 8
      %v625 = vpop.permute.xlu0 %624
      %626 = vrot.lane.b32.xlu0 %v437, 8
      %v627 = vpop.permute.xlu0 %626
      %628 = vrot.lane.b32.xlu0 %v439, 8
      %v629 = vpop.permute.xlu0 %628
      %630 = vrot.lane.b32.xlu0 %v442, 8
      %v631 = vpop.permute.xlu0 %630
      %632 = vrot.lane.b32.xlu0 %v444, 8
      %v633 = vpop.permute.xlu0 %632
      %634 = vrot.lane.b32.xlu0 %v447, 8
      %v635 = vpop.permute.xlu0 %634
      %636 = vrot.lane.b32.xlu0 %v449, 8
      %v637 = vpop.permute.xlu0 %636
      %638 = vrot.lane.b32.xlu0 %v452, 8
      %v639 = vpop.permute.xlu0 %638
      %640 = vrot.lane.b32.xlu0 %v454, 8
      %v641 = vpop.permute.xlu0 %640
      %642 = vrot.lane.b32.xlu0 %v457, 8
      %v643 = vpop.permute.xlu0 %642
      %644 = vrot.lane.b32.xlu0 %v459, 8
      %v645 = vpop.permute.xlu0 %644
      %678 = vrot.lane.b32.xlu0 %v199, 12
      %v679 = vpop.permute.xlu0 %678
      %680 = vrot.lane.b32.xlu0 %v200, 12
      %v681 = vpop.permute.xlu0 %680
      %682 = vrot.lane.b32.xlu0 %v202, 12
      %v683 = vpop.permute.xlu0 %682
      %684 = vrot.lane.b32.xlu0 %v203, 12
      %v685 = vpop.permute.xlu0 %684
      %686 = vrot.lane.b32.xlu0 %v205, 12
      %v687 = vpop.permute.xlu0 %686
      %688 = vrot.lane.b32.xlu0 %v206, 12
      %v689 = vpop.permute.xlu0 %688
      %690 = vrot.lane.b32.xlu0 %v208, 12
      %v691 = vpop.permute.xlu0 %690
      %692 = vrot.lane.b32.xlu0 %v209, 12
      %v693 = vpop.permute.xlu0 %692
      %694 = vrot.lane.b32.xlu0 %v211, 12
      %v695 = vpop.permute.xlu0 %694
      %696 = vrot.lane.b32.xlu0 %v212, 12
      %v697 = vpop.permute.xlu0 %696
      %698 = vrot.lane.b32.xlu0 %v214, 12
      %v699 = vpop.permute.xlu0 %698
      %700 = vrot.lane.b32.xlu0 %v215, 12
      %v701 = vpop.permute.xlu0 %700
      %702 = vrot.lane.b32.xlu0 %v217, 12
      %v703 = vpop.permute.xlu0 %702
      %704 = vrot.lane.b32.xlu0 %v218, 12
      %v705 = vpop.permute.xlu0 %704
      %706 = vrot.lane.b32.xlu0 %v220, 12
      %v707 = vpop.permute.xlu0 %706
      %708 = vrot.lane.b32.xlu0 %v221, 12
      %v709 = vpop.permute.xlu0 %708
      %710 = vrot.lane.b32.xlu0 %v223, 12
      %v711 = vpop.permute.xlu0 %710
      %712 = vrot.lane.b32.xlu0 %v224, 12
      %v713 = vpop.permute.xlu0 %712
      %714 = vrot.lane.b32.xlu0 %v226, 12
      %v715 = vpop.permute.xlu0 %714
      %716 = vrot.lane.b32.xlu0 %v227, 12
      %v717 = vpop.permute.xlu0 %716
      %718 = vrot.lane.b32.xlu0 %v229, 12
      %v719 = vpop.permute.xlu0 %718
      %720 = vrot.lane.b32.xlu0 %v230, 12
      %v721 = vpop.permute.xlu0 %720
      %722 = vrot.lane.b32.xlu0 %v232, 12
      %v723 = vpop.permute.xlu0 %722
      %724 = vrot.lane.b32.xlu0 %v233, 12
      %v725 = vpop.permute.xlu0 %724
      %726 = vrot.lane.b32.xlu0 %v235, 12
      %v727 = vpop.permute.xlu0 %726
      %728 = vrot.lane.b32.xlu0 %v236, 12
      %v729 = vpop.permute.xlu0 %728
      %730 = vrot.lane.b32.xlu0 %v238, 12
      %v731 = vpop.permute.xlu0 %730
      %732 = vrot.lane.b32.xlu0 %v239, 12
      %v733 = vpop.permute.xlu0 %732
      %734 = vrot.lane.b32.xlu0 %v241, 12
      %v735 = vpop.permute.xlu0 %734
      %736 = vrot.lane.b32.xlu0 %v242, 12
      %v737 = vpop.permute.xlu0 %736
      %738 = vrot.lane.b32.xlu0 %v244, 12
      %v739 = vpop.permute.xlu0 %738
      %740 = vrot.lane.b32.xlu0 %v245, 12
      %v741 = vpop.permute.xlu0 %740
      %774 = vrot.lane.b32.xlu0 %v306, 16
      %v775 = vpop.permute.xlu0 %774
      %776 = vrot.lane.b32.xlu0 %v308, 16
      %v777 = vpop.permute.xlu0 %776
      %778 = vrot.lane.b32.xlu0 %v311, 16
      %v779 = vpop.permute.xlu0 %778
      %780 = vrot.lane.b32.xlu0 %v313, 16
      %v781 = vpop.permute.xlu0 %780
      %782 = vrot.lane.b32.xlu0 %v316, 16
      %v783 = vpop.permute.xlu0 %782
      %784 = vrot.lane.b32.xlu0 %v318, 16
      %v785 = vpop.permute.xlu0 %784
      %786 = vrot.lane.b32.xlu0 %v321, 16
      %v787 = vpop.permute.xlu0 %786
      %788 = vrot.lane.b32.xlu0 %v323, 16
      %v789 = vpop.permute.xlu0 %788
      %790 = vrot.lane.b32.xlu0 %v326, 16
      %v791 = vpop.permute.xlu0 %790
      %792 = vrot.lane.b32.xlu0 %v328, 16
      %v793 = vpop.permute.xlu0 %792
      %794 = vrot.lane.b32.xlu0 %v331, 16
      %v795 = vpop.permute.xlu0 %794
      %796 = vrot.lane.b32.xlu0 %v333, 16
      %v797 = vpop.permute.xlu0 %796
      %798 = vrot.lane.b32.xlu0 %v336, 16
      %v799 = vpop.permute.xlu0 %798
      %800 = vrot.lane.b32.xlu0 %v338, 16
      %v801 = vpop.permute.xlu0 %800
      %802 = vrot.lane.b32.xlu0 %v341, 16
      %v803 = vpop.permute.xlu0 %802
      %804 = vrot.lane.b32.xlu0 %v343, 16
      %v805 = vpop.permute.xlu0 %804
      %806 = vrot.lane.b32.xlu0 %v346, 16
      %v807 = vpop.permute.xlu0 %806
      %808 = vrot.lane.b32.xlu0 %v348, 16
      %v809 = vpop.permute.xlu0 %808
      %810 = vrot.lane.b32.xlu0 %v351, 16
      %v811 = vpop.permute.xlu0 %810
      %812 = vrot.lane.b32.xlu0 %v353, 16
      %v813 = vpop.permute.xlu0 %812
      %814 = vrot.lane.b32.xlu0 %v356, 16
      %v815 = vpop.permute.xlu0 %814
      %816 = vrot.lane.b32.xlu0 %v358, 16
      %v817 = vpop.permute.xlu0 %816
      %818 = vrot.lane.b32.xlu0 %v361, 16
      %v819 = vpop.permute.xlu0 %818
      %820 = vrot.lane.b32.xlu0 %v363, 16
      %v821 = vpop.permute.xlu0 %820
      %822 = vrot.lane.b32.xlu0 %v366, 16
      %v823 = vpop.permute.xlu0 %822
      %824 = vrot.lane.b32.xlu0 %v368, 16
      %v825 = vpop.permute.xlu0 %824
      %826 = vrot.lane.b32.xlu0 %v371, 16
      %v827 = vpop.permute.xlu0 %826
      %828 = vrot.lane.b32.xlu0 %v373, 16
      %v829 = vpop.permute.xlu0 %828
      %830 = vrot.lane.b32.xlu0 %v376, 16
      %v831 = vpop.permute.xlu0 %830
      %832 = vrot.lane.b32.xlu0 %v378, 16
      %v833 = vpop.permute.xlu0 %832
      %834 = vrot.lane.b32.xlu0 %v465, 16
      %v835 = vpop.permute.xlu0 %834
      %836 = vrot.lane.b32.xlu0 %v467, 16
      %v837 = vpop.permute.xlu0 %836
      %870 = vrot.lane.b32.xlu0 %v387, 20
      %v871 = vpop.permute.xlu0 %870
      %872 = vrot.lane.b32.xlu0 %v389, 20
      %v873 = vpop.permute.xlu0 %872
      %874 = vrot.lane.b32.xlu0 %v392, 20
      %v875 = vpop.permute.xlu0 %874
      %876 = vrot.lane.b32.xlu0 %v394, 20
      %v877 = vpop.permute.xlu0 %876
      %878 = vrot.lane.b32.xlu0 %v397, 20
      %v879 = vpop.permute.xlu0 %878
      %880 = vrot.lane.b32.xlu0 %v399, 20
      %v881 = vpop.permute.xlu0 %880
      %882 = vrot.lane.b32.xlu0 %v402, 20
      %v883 = vpop.permute.xlu0 %882
      %884 = vrot.lane.b32.xlu0 %v404, 20
      %v885 = vpop.permute.xlu0 %884
      %886 = vrot.lane.b32.xlu0 %v407, 20
      %v887 = vpop.permute.xlu0 %886
      %888 = vrot.lane.b32.xlu0 %v409, 20
      %v889 = vpop.permute.xlu0 %888
      %890 = vrot.lane.b32.xlu0 %v412, 20
      %v891 = vpop.permute.xlu0 %890
      %892 = vrot.lane.b32.xlu0 %v414, 20
      %v893 = vpop.permute.xlu0 %892
      %894 = vrot.lane.b32.xlu0 %v417, 20
      %v895 = vpop.permute.xlu0 %894
      %896 = vrot.lane.b32.xlu0 %v419, 20
      %v897 = vpop.permute.xlu0 %896
      %898 = vrot.lane.b32.xlu0 %v422, 20
      %v899 = vpop.permute.xlu0 %898
      %900 = vrot.lane.b32.xlu0 %v424, 20
      %v901 = vpop.permute.xlu0 %900
      %902 = vrot.lane.b32.xlu0 %v427, 20
      %v903 = vpop.permute.xlu0 %902
      %904 = vrot.lane.b32.xlu0 %v429, 20
      %v905 = vpop.permute.xlu0 %904
      %906 = vrot.lane.b32.xlu0 %v432, 20
      %v907 = vpop.permute.xlu0 %906
      %908 = vrot.lane.b32.xlu0 %v434, 20
      %v909 = vpop.permute.xlu0 %908
      %910 = vrot.lane.b32.xlu0 %v437, 20
      %v911 = vpop.permute.xlu0 %910
      %912 = vrot.lane.b32.xlu0 %v439, 20
      %v913 = vpop.permute.xlu0 %912
      %914 = vrot.lane.b32.xlu0 %v442, 20
      %v915 = vpop.permute.xlu0 %914
      %916 = vrot.lane.b32.xlu0 %v444, 20
      %v917 = vpop.permute.xlu0 %916
      %918 = vrot.lane.b32.xlu0 %v447, 20
      %v919 = vpop.permute.xlu0 %918
      %920 = vrot.lane.b32.xlu0 %v449, 20
      %v921 = vpop.permute.xlu0 %920
      %922 = vrot.lane.b32.xlu0 %v452, 20
      %v923 = vpop.permute.xlu0 %922
      %924 = vrot.lane.b32.xlu0 %v454, 20
      %v925 = vpop.permute.xlu0 %924
      %926 = vrot.lane.b32.xlu0 %v457, 20
      %v927 = vpop.permute.xlu0 %926
      %928 = vrot.lane.b32.xlu0 %v459, 20
      %v929 = vpop.permute.xlu0 %928
      %930 = vrot.lane.b32.xlu0 %v470, 20
      %v931 = vpop.permute.xlu0 %930
      %932 = vrot.lane.b32.xlu0 %v472, 20
      %v933 = vpop.permute.xlu0 %932
      %966 = vrot.lane.b32.xlu0 %v202, 24
      %v967 = vpop.permute.xlu0 %966
      %968 = vrot.lane.b32.xlu0 %v203, 24
      %v969 = vpop.permute.xlu0 %968
      %970 = vrot.lane.b32.xlu0 %v205, 24
      %v971 = vpop.permute.xlu0 %970
      %972 = vrot.lane.b32.xlu0 %v206, 24
      %v973 = vpop.permute.xlu0 %972
      %974 = vrot.lane.b32.xlu0 %v208, 24
      %v975 = vpop.permute.xlu0 %974
      %976 = vrot.lane.b32.xlu0 %v209, 24
      %v977 = vpop.permute.xlu0 %976
      %978 = vrot.lane.b32.xlu0 %v211, 24
      %v979 = vpop.permute.xlu0 %978
      %980 = vrot.lane.b32.xlu0 %v212, 24
      %v981 = vpop.permute.xlu0 %980
      %982 = vrot.lane.b32.xlu0 %v214, 24
      %v983 = vpop.permute.xlu0 %982
      %984 = vrot.lane.b32.xlu0 %v215, 24
      %v985 = vpop.permute.xlu0 %984
      %986 = vrot.lane.b32.xlu0 %v217, 24
      %v987 = vpop.permute.xlu0 %986
      %988 = vrot.lane.b32.xlu0 %v218, 24
      %v989 = vpop.permute.xlu0 %988
      %990 = vrot.lane.b32.xlu0 %v220, 24
      %v991 = vpop.permute.xlu0 %990
      %992 = vrot.lane.b32.xlu0 %v221, 24
      %v993 = vpop.permute.xlu0 %992
      %994 = vrot.lane.b32.xlu0 %v223, 24
      %v995 = vpop.permute.xlu0 %994
      %996 = vrot.lane.b32.xlu0 %v224, 24
      %v997 = vpop.permute.xlu0 %996
      %998 = vrot.lane.b32.xlu0 %v226, 24
      %v999 = vpop.permute.xlu0 %998
      %1000 = vrot.lane.b32.xlu0 %v227, 24
      %v1001 = vpop.permute.xlu0 %1000
      %1002 = vrot.lane.b32.xlu0 %v229, 24
      %v1003 = vpop.permute.xlu0 %1002
      %1004 = vrot.lane.b32.xlu0 %v230, 24
      %v1005 = vpop.permute.xlu0 %1004
      %1006 = vrot.lane.b32.xlu0 %v232, 24
      %v1007 = vpop.permute.xlu0 %1006
      %1008 = vrot.lane.b32.xlu0 %v233, 24
      %v1009 = vpop.permute.xlu0 %1008
      %1010 = vrot.lane.b32.xlu0 %v235, 24
      %v1011 = vpop.permute.xlu0 %1010
      %1012 = vrot.lane.b32.xlu0 %v236, 24
      %v1013 = vpop.permute.xlu0 %1012
      %1014 = vrot.lane.b32.xlu0 %v238, 24
      %v1015 = vpop.permute.xlu0 %1014
      %1016 = vrot.lane.b32.xlu0 %v239, 24
      %v1017 = vpop.permute.xlu0 %1016
      %1018 = vrot.lane.b32.xlu0 %v241, 24
      %v1019 = vpop.permute.xlu0 %1018
      %1020 = vrot.lane.b32.xlu0 %v242, 24
      %v1021 = vpop.permute.xlu0 %1020
      %1022 = vrot.lane.b32.xlu0 %v244, 24
      %v1023 = vpop.permute.xlu0 %1022
      %1024 = vrot.lane.b32.xlu0 %v245, 24
      %v1025 = vpop.permute.xlu0 %1024
      %1026 = vrot.lane.b32.xlu0 %v247, 24
      %v1027 = vpop.permute.xlu0 %1026
      %1028 = vrot.lane.b32.xlu0 %v248, 24
      %v1029 = vpop.permute.xlu0 %1028
      %1062 = vrot.lane.b32.xlu0 %v311, 28
      %v1063 = vpop.permute.xlu0 %1062
      %1064 = vrot.lane.b32.xlu0 %v313, 28
      %v1065 = vpop.permute.xlu0 %1064
      %1066 = vrot.lane.b32.xlu0 %v316, 28
      %v1067 = vpop.permute.xlu0 %1066
      %1068 = vrot.lane.b32.xlu0 %v318, 28
      %v1069 = vpop.permute.xlu0 %1068
      %1070 = vrot.lane.b32.xlu0 %v321, 28
      %v1071 = vpop.permute.xlu0 %1070
      %1072 = vrot.lane.b32.xlu0 %v323, 28
      %v1073 = vpop.permute.xlu0 %1072
      %1074 = vrot.lane.b32.xlu0 %v326, 28
      %v1075 = vpop.permute.xlu0 %1074
      %1076 = vrot.lane.b32.xlu0 %v328, 28
      %v1077 = vpop.permute.xlu0 %1076
      %1078 = vrot.lane.b32.xlu0 %v331, 28
      %v1079 = vpop.permute.xlu0 %1078
      %1080 = vrot.lane.b32.xlu0 %v333, 28
      %v1081 = vpop.permute.xlu0 %1080
      %1082 = vrot.lane.b32.xlu0 %v336, 28
      %v1083 = vpop.permute.xlu0 %1082
      %1084 = vrot.lane.b32.xlu0 %v338, 28
      %v1085 = vpop.permute.xlu0 %1084
      %1086 = vrot.lane.b32.xlu0 %v341, 28
      %v1087 = vpop.permute.xlu0 %1086
      %1088 = vrot.lane.b32.xlu0 %v343, 28
      %v1089 = vpop.permute.xlu0 %1088
      %1090 = vrot.lane.b32.xlu0 %v346, 28
      %v1091 = vpop.permute.xlu0 %1090
      %1092 = vrot.lane.b32.xlu0 %v348, 28
      %v1093 = vpop.permute.xlu0 %1092
      %1094 = vrot.lane.b32.xlu0 %v351, 28
      %v1095 = vpop.permute.xlu0 %1094
      %1096 = vrot.lane.b32.xlu0 %v353, 28
      %v1097 = vpop.permute.xlu0 %1096
      %1098 = vrot.lane.b32.xlu0 %v356, 28
      %v1099 = vpop.permute.xlu0 %1098
      %1100 = vrot.lane.b32.xlu0 %v358, 28
      %v1101 = vpop.permute.xlu0 %1100
      %1102 = vrot.lane.b32.xlu0 %v361, 28
      %v1103 = vpop.permute.xlu0 %1102
      %1104 = vrot.lane.b32.xlu0 %v363, 28
      %v1105 = vpop.permute.xlu0 %1104
      %1106 = vrot.lane.b32.xlu0 %v366, 28
      %v1107 = vpop.permute.xlu0 %1106
      %1108 = vrot.lane.b32.xlu0 %v368, 28
      %v1109 = vpop.permute.xlu0 %1108
      %1110 = vrot.lane.b32.xlu0 %v371, 28
      %v1111 = vpop.permute.xlu0 %1110
      %1112 = vrot.lane.b32.xlu0 %v373, 28
      %v1113 = vpop.permute.xlu0 %1112
      %1114 = vrot.lane.b32.xlu0 %v376, 28
      %v1115 = vpop.permute.xlu0 %1114
      %1116 = vrot.lane.b32.xlu0 %v378, 28
      %v1117 = vpop.permute.xlu0 %1116
      %1118 = vrot.lane.b32.xlu0 %v465, 28
      %v1119 = vpop.permute.xlu0 %1118
      %1120 = vrot.lane.b32.xlu0 %v467, 28
      %v1121 = vpop.permute.xlu0 %1120
      %1122 = vrot.lane.b32.xlu0 %v478, 28
      %v1123 = vpop.permute.xlu0 %1122
      %1124 = vrot.lane.b32.xlu0 %v480, 28
      %v1125 = vpop.permute.xlu0 %1124
      %1158 = vrot.lane.b32.xlu0 %v392, 32
      %v1159 = vpop.permute.xlu0 %1158
      %1160 = vrot.lane.b32.xlu0 %v394, 32
      %v1161 = vpop.permute.xlu0 %1160
      %1162 = vrot.lane.b32.xlu0 %v397, 32
      %v1163 = vpop.permute.xlu0 %1162
      %1164 = vrot.lane.b32.xlu0 %v399, 32
      %v1165 = vpop.permute.xlu0 %1164
      %1166 = vrot.lane.b32.xlu0 %v402, 32
      %v1167 = vpop.permute.xlu0 %1166
      %1168 = vrot.lane.b32.xlu0 %v404, 32
      %v1169 = vpop.permute.xlu0 %1168
      %1170 = vrot.lane.b32.xlu0 %v407, 32
      %v1171 = vpop.permute.xlu0 %1170
      %1172 = vrot.lane.b32.xlu0 %v409, 32
      %v1173 = vpop.permute.xlu0 %1172
      %1174 = vrot.lane.b32.xlu0 %v412, 32
      %v1175 = vpop.permute.xlu0 %1174
      %1176 = vrot.lane.b32.xlu0 %v414, 32
      %v1177 = vpop.permute.xlu0 %1176
      %1178 = vrot.lane.b32.xlu0 %v417, 32
      %v1179 = vpop.permute.xlu0 %1178
      %1180 = vrot.lane.b32.xlu0 %v419, 32
      %v1181 = vpop.permute.xlu0 %1180
      %1182 = vrot.lane.b32.xlu0 %v422, 32
      %v1183 = vpop.permute.xlu0 %1182
      %1184 = vrot.lane.b32.xlu0 %v424, 32
      %v1185 = vpop.permute.xlu0 %1184
      %1186 = vrot.lane.b32.xlu0 %v427, 32
      %v1187 = vpop.permute.xlu0 %1186
      %1188 = vrot.lane.b32.xlu0 %v429, 32
      %v1189 = vpop.permute.xlu0 %1188
      %1190 = vrot.lane.b32.xlu0 %v432, 32
      %v1191 = vpop.permute.xlu0 %1190
      %1192 = vrot.lane.b32.xlu0 %v434, 32
      %v1193 = vpop.permute.xlu0 %1192
      %1194 = vrot.lane.b32.xlu0 %v437, 32
      %v1195 = vpop.permute.xlu0 %1194
      %1196 = vrot.lane.b32.xlu0 %v439, 32
      %v1197 = vpop.permute.xlu0 %1196
      %1198 = vrot.lane.b32.xlu0 %v442, 32
      %v1199 = vpop.permute.xlu0 %1198
      %1200 = vrot.lane.b32.xlu0 %v444, 32
      %v1201 = vpop.permute.xlu0 %1200
      %1202 = vrot.lane.b32.xlu0 %v447, 32
      %v1203 = vpop.permute.xlu0 %1202
      %1204 = vrot.lane.b32.xlu0 %v449, 32
      %v1205 = vpop.permute.xlu0 %1204
      %1206 = vrot.lane.b32.xlu0 %v452, 32
      %v1207 = vpop.permute.xlu0 %1206
      %1208 = vrot.lane.b32.xlu0 %v454, 32
      %v1209 = vpop.permute.xlu0 %1208
      %1210 = vrot.lane.b32.xlu0 %v457, 32
      %v1211 = vpop.permute.xlu0 %1210
      %1212 = vrot.lane.b32.xlu0 %v459, 32
      %v1213 = vpop.permute.xlu0 %1212
      %1214 = vrot.lane.b32.xlu0 %v470, 32
      %v1215 = vpop.permute.xlu0 %1214
      %1216 = vrot.lane.b32.xlu0 %v472, 32
      %v1217 = vpop.permute.xlu0 %1216
      %1218 = vrot.lane.b32.xlu0 %v483, 32
      %v1219 = vpop.permute.xlu0 %1218
      %1220 = vrot.lane.b32.xlu0 %v485, 32
      %v1221 = vpop.permute.xlu0 %1220
      %vm1254 = vcmask 31744
      %v1255 = vsel %vm1254, %v196, %v487
      %v1256 = vsel %vm1254, %v197, %v489
      %v1257 = vsel %vm1254, %v199, %v491
      %v1258 = vsel %vm1254, %v200, %v493
      %v1259 = vsel %vm1254, %v202, %v495
      %v1260 = vsel %vm1254, %v203, %v497
      %v1261 = vsel %vm1254, %v205, %v499
      %v1262 = vsel %vm1254, %v206, %v501
      %v1263 = vsel %vm1254, %v208, %v503
      %v1264 = vsel %vm1254, %v209, %v505
      %v1265 = vsel %vm1254, %v211, %v507
      %v1266 = vsel %vm1254, %v212, %v509
      %v1267 = vsel %vm1254, %v214, %v511
      %v1268 = vsel %vm1254, %v215, %v513
      %v1269 = vsel %vm1254, %v217, %v515
      %v1270 = vsel %vm1254, %v218, %v517
      %v1271 = vsel %vm1254, %v220, %v519
      %v1272 = vsel %vm1254, %v221, %v521
      %v1273 = vsel %vm1254, %v223, %v523
      %v1274 = vsel %vm1254, %v224, %v525
      %v1275 = vsel %vm1254, %v226, %v527
      %v1276 = vsel %vm1254, %v227, %v529
      %v1277 = vsel %vm1254, %v229, %v531
      %v1278 = vsel %vm1254, %v230, %v533
      %v1279 = vsel %vm1254, %v232, %v535
      %v1280 = vsel %vm1254, %v233, %v537
      %v1281 = vsel %vm1254, %v235, %v539
      %v1282 = vsel %vm1254, %v236, %v541
      %v1283 = vsel %vm1254, %v238, %v543
      %v1284 = vsel %vm1254, %v239, %v545
      %v1285 = vsel %vm1254, %v241, %v547
      %v1286 = vsel %vm1254, %v242, %v549
      %vm1287 = vcmask 64512
      %v1288 = vsel %vm1287, %v1255, %v583
      %v1289 = vsel %vm1287, %v1256, %v585
      %v1290 = vsel %vm1287, %v1257, %v587
      %v1291 = vsel %vm1287, %v1258, %v589
      %v1292 = vsel %vm1287, %v1259, %v591
      %v1293 = vsel %vm1287, %v1260, %v593
      %v1294 = vsel %vm1287, %v1261, %v595
      %v1295 = vsel %vm1287, %v1262, %v597
      %v1296 = vsel %vm1287, %v1263, %v599
      %v1297 = vsel %vm1287, %v1264, %v601
      %v1298 = vsel %vm1287, %v1265, %v603
      %v1299 = vsel %vm1287, %v1266, %v605
      %v1300 = vsel %vm1287, %v1267, %v607
      %v1301 = vsel %vm1287, %v1268, %v609
      %v1302 = vsel %vm1287, %v1269, %v611
      %v1303 = vsel %vm1287, %v1270, %v613
      %v1304 = vsel %vm1287, %v1271, %v615
      %v1305 = vsel %vm1287, %v1272, %v617
      %v1306 = vsel %vm1287, %v1273, %v619
      %v1307 = vsel %vm1287, %v1274, %v621
      %v1308 = vsel %vm1287, %v1275, %v623
      %v1309 = vsel %vm1287, %v1276, %v625
      %v1310 = vsel %vm1287, %v1277, %v627
      %v1311 = vsel %vm1287, %v1278, %v629
      %v1312 = vsel %vm1287, %v1279, %v631
      %v1313 = vsel %vm1287, %v1280, %v633
      %v1314 = vsel %vm1287, %v1281, %v635
      %v1315 = vsel %vm1287, %v1282, %v637
      %v1316 = vsel %vm1287, %v1283, %v639
      %v1317 = vsel %vm1287, %v1284, %v641
      %v1318 = vsel %vm1287, %v1285, %v643
      %v1319 = vsel %vm1287, %v1286, %v645
      %vm1320 = vcmask 97280
      %v1321 = vsel %vm1320, %v1288, %v679
      %v1322 = vsel %vm1320, %v1289, %v681
      %v1323 = vsel %vm1320, %v1290, %v683
      %v1324 = vsel %vm1320, %v1291, %v685
      %v1325 = vsel %vm1320, %v1292, %v687
      %v1326 = vsel %vm1320, %v1293, %v689
      %v1327 = vsel %vm1320, %v1294, %v691
      %v1328 = vsel %vm1320, %v1295, %v693
      %v1329 = vsel %vm1320, %v1296, %v695
      %v1330 = vsel %vm1320, %v1297, %v697
      %v1331 = vsel %vm1320, %v1298, %v699
      %v1332 = vsel %vm1320, %v1299, %v701
      %v1333 = vsel %vm1320, %v1300, %v703
      %v1334 = vsel %vm1320, %v1301, %v705
      %v1335 = vsel %vm1320, %v1302, %v707
      %v1336 = vsel %vm1320, %v1303, %v709
      %v1337 = vsel %vm1320, %v1304, %v711
      %v1338 = vsel %vm1320, %v1305, %v713
      %v1339 = vsel %vm1320, %v1306, %v715
      %v1340 = vsel %vm1320, %v1307, %v717
      %v1341 = vsel %vm1320, %v1308, %v719
      %v1342 = vsel %vm1320, %v1309, %v721
      %v1343 = vsel %vm1320, %v1310, %v723
      %v1344 = vsel %vm1320, %v1311, %v725
      %v1345 = vsel %vm1320, %v1312, %v727
      %v1346 = vsel %vm1320, %v1313, %v729
      %v1347 = vsel %vm1320, %v1314, %v731
      %v1348 = vsel %vm1320, %v1315, %v733
      %v1349 = vsel %vm1320, %v1316, %v735
      %v1350 = vsel %vm1320, %v1317, %v737
      %v1351 = vsel %vm1320, %v1318, %v739
      %v1352 = vsel %vm1320, %v1319, %v741
      %vm1353 = vcmask 130048
      %v1354 = vsel %vm1353, %v1321, %v775
      %v1355 = vsel %vm1353, %v1322, %v777
      %v1356 = vsel %vm1353, %v1323, %v779
      %v1357 = vsel %vm1353, %v1324, %v781
      %v1358 = vsel %vm1353, %v1325, %v783
      %v1359 = vsel %vm1353, %v1326, %v785
      %v1360 = vsel %vm1353, %v1327, %v787
      %v1361 = vsel %vm1353, %v1328, %v789
      %v1362 = vsel %vm1353, %v1329, %v791
      %v1363 = vsel %vm1353, %v1330, %v793
      %v1364 = vsel %vm1353, %v1331, %v795
      %v1365 = vsel %vm1353, %v1332, %v797
      %v1366 = vsel %vm1353, %v1333, %v799
      %v1367 = vsel %vm1353, %v1334, %v801
      %v1368 = vsel %vm1353, %v1335, %v803
      %v1369 = vsel %vm1353, %v1336, %v805
      %v1370 = vsel %vm1353, %v1337, %v807
      %v1371 = vsel %vm1353, %v1338, %v809
      %v1372 = vsel %vm1353, %v1339, %v811
      %v1373 = vsel %vm1353, %v1340, %v813
      %v1374 = vsel %vm1353, %v1341, %v815
      %v1375 = vsel %vm1353, %v1342, %v817
      %v1376 = vsel %vm1353, %v1343, %v819
      %v1377 = vsel %vm1353, %v1344, %v821
      %v1378 = vsel %vm1353, %v1345, %v823
      %v1379 = vsel %vm1353, %v1346, %v825
      %v1380 = vsel %vm1353, %v1347, %v827
      %v1381 = vsel %vm1353, %v1348, %v829
      %v1382 = vsel %vm1353, %v1349, %v831
      %v1383 = vsel %vm1353, %v1350, %v833
      %v1384 = vsel %vm1353, %v1351, %v835
      %v1385 = vsel %vm1353, %v1352, %v837
      %vm1386 = vcmask 162816
      %v1387 = vsel %vm1386, %v1354, %v871
      %v1388 = vsel %vm1386, %v1355, %v873
      %v1389 = vsel %vm1386, %v1356, %v875
      %v1390 = vsel %vm1386, %v1357, %v877
      %v1391 = vsel %vm1386, %v1358, %v879
      %v1392 = vsel %vm1386, %v1359, %v881
      %v1393 = vsel %vm1386, %v1360, %v883
      %v1394 = vsel %vm1386, %v1361, %v885
      %v1395 = vsel %vm1386, %v1362, %v887
      %v1396 = vsel %vm1386, %v1363, %v889
      %v1397 = vsel %vm1386, %v1364, %v891
      %v1398 = vsel %vm1386, %v1365, %v893
      %v1399 = vsel %vm1386, %v1366, %v895
      %v1400 = vsel %vm1386, %v1367, %v897
      %v1401 = vsel %vm1386, %v1368, %v899
      %v1402 = vsel %vm1386, %v1369, %v901
      %v1403 = vsel %vm1386, %v1370, %v903
      %v1404 = vsel %vm1386, %v1371, %v905
      %v1405 = vsel %vm1386, %v1372, %v907
      %v1406 = vsel %vm1386, %v1373, %v909
      %v1407 = vsel %vm1386, %v1374, %v911
      %v1408 = vsel %vm1386, %v1375, %v913
      %v1409 = vsel %vm1386, %v1376, %v915
      %v1410 = vsel %vm1386, %v1377, %v917
      %v1411 = vsel %vm1386, %v1378, %v919
      %v1412 = vsel %vm1386, %v1379, %v921
      %v1413 = vsel %vm1386, %v1380, %v923
      %v1414 = vsel %vm1386, %v1381, %v925
      %v1415 = vsel %vm1386, %v1382, %v927
      %v1416 = vsel %vm1386, %v1383, %v929
      %v1417 = vsel %vm1386, %v1384, %v931
      %v1418 = vsel %vm1386, %v1385, %v933
      %vm1419 = vcmask 195584
      %v1420 = vsel %vm1419, %v1387, %v967
      %v1421 = vsel %vm1419, %v1388, %v969
      %v1422 = vsel %vm1419, %v1389, %v971
      %v1423 = vsel %vm1419, %v1390, %v973
      %v1424 = vsel %vm1419, %v1391, %v975
      %v1425 = vsel %vm1419, %v1392, %v977
      %v1426 = vsel %vm1419, %v1393, %v979
      %v1427 = vsel %vm1419, %v1394, %v981
      %v1428 = vsel %vm1419, %v1395, %v983
      %v1429 = vsel %vm1419, %v1396, %v985
      %v1430 = vsel %vm1419, %v1397, %v987
      %v1431 = vsel %vm1419, %v1398, %v989
      %v1432 = vsel %vm1419, %v1399, %v991
      %v1433 = vsel %vm1419, %v1400, %v993
      %v1434 = vsel %vm1419, %v1401, %v995
      %v1435 = vsel %vm1419, %v1402, %v997
      %v1436 = vsel %vm1419, %v1403, %v999
      %v1437 = vsel %vm1419, %v1404, %v1001
      %v1438 = vsel %vm1419, %v1405, %v1003
      %v1439 = vsel %vm1419, %v1406, %v1005
      %v1440 = vsel %vm1419, %v1407, %v1007
      %v1441 = vsel %vm1419, %v1408, %v1009
      %v1442 = vsel %vm1419, %v1409, %v1011
      %v1443 = vsel %vm1419, %v1410, %v1013
      %v1444 = vsel %vm1419, %v1411, %v1015
      %v1445 = vsel %vm1419, %v1412, %v1017
      %v1446 = vsel %vm1419, %v1413, %v1019
      %v1447 = vsel %vm1419, %v1414, %v1021
      %v1448 = vsel %vm1419, %v1415, %v1023
      %v1449 = vsel %vm1419, %v1416, %v1025
      %v1450 = vsel %vm1419, %v1417, %v1027
      %v1451 = vsel %vm1419, %v1418, %v1029
      %vm1452 = vcmask 228352
      %v1453 = vsel %vm1452, %v1420, %v1063
      %v1454 = vsel %vm1452, %v1421, %v1065
      %v1455 = vsel %vm1452, %v1422, %v1067
      %v1456 = vsel %vm1452, %v1423, %v1069
      %v1457 = vsel %vm1452, %v1424, %v1071
      %v1458 = vsel %vm1452, %v1425, %v1073
      %v1459 = vsel %vm1452, %v1426, %v1075
      %v1460 = vsel %vm1452, %v1427, %v1077
      %v1461 = vsel %vm1452, %v1428, %v1079
      %v1462 = vsel %vm1452, %v1429, %v1081
      %v1463 = vsel %vm1452, %v1430, %v1083
      %v1464 = vsel %vm1452, %v1431, %v1085
      %v1465 = vsel %vm1452, %v1432, %v1087
      %v1466 = vsel %vm1452, %v1433, %v1089
      %v1467 = vsel %vm1452, %v1434, %v1091
      %v1468 = vsel %vm1452, %v1435, %v1093
      %v1469 = vsel %vm1452, %v1436, %v1095
      %v1470 = vsel %vm1452, %v1437, %v1097
      %v1471 = vsel %vm1452, %v1438, %v1099
      %v1472 = vsel %vm1452, %v1439, %v1101
      %v1473 = vsel %vm1452, %v1440, %v1103
      %v1474 = vsel %vm1452, %v1441, %v1105
      %v1475 = vsel %vm1452, %v1442, %v1107
      %v1476 = vsel %vm1452, %v1443, %v1109
      %v1477 = vsel %vm1452, %v1444, %v1111
      %v1478 = vsel %vm1452, %v1445, %v1113
      %v1479 = vsel %vm1452, %v1446, %v1115
      %v1480 = vsel %vm1452, %v1447, %v1117
      %v1481 = vsel %vm1452, %v1448, %v1119
      %v1482 = vsel %vm1452, %v1449, %v1121
      %v1483 = vsel %vm1452, %v1450, %v1123
      %v1484 = vsel %vm1452, %v1451, %v1125
      %vm1485 = vcmask 261120
      %v1486 = vsel %vm1485, %v1453, %v1159
      %v1487 = vsel %vm1485, %v1454, %v1161
      %v1488 = vsel %vm1485, %v1455, %v1163
      %v1489 = vsel %vm1485, %v1456, %v1165
      %v1490 = vsel %vm1485, %v1457, %v1167
      %v1491 = vsel %vm1485, %v1458, %v1169
      %v1492 = vsel %vm1485, %v1459, %v1171
      %v1493 = vsel %vm1485, %v1460, %v1173
      %v1494 = vsel %vm1485, %v1461, %v1175
      %v1495 = vsel %vm1485, %v1462, %v1177
      %v1496 = vsel %vm1485, %v1463, %v1179
      %v1497 = vsel %vm1485, %v1464, %v1181
      %v1498 = vsel %vm1485, %v1465, %v1183
      %v1499 = vsel %vm1485, %v1466, %v1185
      %v1500 = vsel %vm1485, %v1467, %v1187
      %v1501 = vsel %vm1485, %v1468, %v1189
      %v1502 = vsel %vm1485, %v1469, %v1191
      %v1503 = vsel %vm1485, %v1470, %v1193
      %v1504 = vsel %vm1485, %v1471, %v1195
      %v1505 = vsel %vm1485, %v1472, %v1197
      %v1506 = vsel %vm1485, %v1473, %v1199
      %v1507 = vsel %vm1485, %v1474, %v1201
      %v1508 = vsel %vm1485, %v1475, %v1203
      %v1509 = vsel %vm1485, %v1476, %v1205
      %v1510 = vsel %vm1485, %v1477, %v1207
      %v1511 = vsel %vm1485, %v1478, %v1209
      %v1512 = vsel %vm1485, %v1479, %v1211
      %v1513 = vsel %vm1485, %v1480, %v1213
      %v1514 = vsel %vm1485, %v1481, %v1215
      %v1515 = vsel %vm1485, %v1482, %v1217
      %v1516 = vsel %vm1485, %v1483, %v1219
      %v1517 = vsel %vm1485, %v1484, %v1221
      %vm1518 = vcmask 293888
      %v1519 = vsel %vm1518, %v1486, 0.0
      %v1520 = vsel %vm1518, %v1487, 0.0
      %v1521 = vsel %vm1518, %v1488, 0.0
      %v1522 = vsel %vm1518, %v1489, 0.0
      %v1523 = vsel %vm1518, %v1490, 0.0
      %v1524 = vsel %vm1518, %v1491, 0.0
      %v1525 = vsel %vm1518, %v1492, 0.0
      %v1526 = vsel %vm1518, %v1493, 0.0
      %v1527 = vsel %vm1518, %v1494, 0.0
      %v1528 = vsel %vm1518, %v1495, 0.0
      %v1529 = vsel %vm1518, %v1496, 0.0
      %v1530 = vsel %vm1518, %v1497, 0.0
      %v1531 = vsel %vm1518, %v1498, 0.0
      %v1532 = vsel %vm1518, %v1499, 0.0
      %v1533 = vsel %vm1518, %v1500, 0.0
      %v1534 = vsel %vm1518, %v1501, 0.0
      %v1535 = vsel %vm1518, %v1502, 0.0
      %v1536 = vsel %vm1518, %v1503, 0.0
      %v1537 = vsel %vm1518, %v1504, 0.0
      %v1538 = vsel %vm1518, %v1505, 0.0
      %v1539 = vsel %vm1518, %v1506, 0.0
      %v1540 = vsel %vm1518, %v1507, 0.0
      %v1541 = vsel %vm1518, %v1508, 0.0
      %v1542 = vsel %vm1518, %v1509, 0.0
      %v1543 = vsel %vm1518, %v1510, 0.0
      %v1544 = vsel %vm1518, %v1511, 0.0
      %v1545 = vsel %vm1518, %v1512, 0.0
      %v1546 = vsel %vm1518, %v1513, 0.0
      %v1547 = vsel %vm1518, %v1514, 0.0
      %v1548 = vsel %vm1518, %v1515, 0.0
      %v1549 = vsel %vm1518, %v1516, 0.0
      %v1550 = vsel %vm1518, %v1517, 0.0
      %v1551 = vld [vmem:[%s1] sm:$0xff]
      %v1552 = vld [vmem:[%s1 + $0x8] sm:$0xff]
      %v1553 = vld [vmem:[%s1 + $0x10] sm:$0xff]
      %v1554 = vld [vmem:[%s1 + $0x18] sm:$0xff]
      %v1555 = vld [vmem:[%s1 + $0x20] sm:$0xff]
      %v1556 = vld [vmem:[%s1 + $0x28] sm:$0xff]
      %v1557 = vld [vmem:[%s1 + $0x30] sm:$0xff]
      %v1558 = vld [vmem:[%s1 + $0x38] sm:$0xff]
      %v1559 = vld [vmem:[%s1 + $0x40] sm:$0xff]
      %v1560 = vld [vmem:[%s1 + $0x48] sm:$0xff]
      %v1561 = vld [vmem:[%s1 + $0x50] sm:$0xff]
      %v1562 = vld [vmem:[%s1 + $0x58] sm:$0xff]
      %v1563 = vld [vmem:[%s1 + $0x60] sm:$0xff]
      %v1564 = vld [vmem:[%s1 + $0x68] sm:$0xff]
      %v1565 = vld [vmem:[%s1 + $0x70] sm:$0xff]
      %v1566 = vld [vmem:[%s1 + $0x78] sm:$0xff]
      %v1567 = vld [vmem:[%s2] sm:$0x1]
      %v1569 = vlaneseq
      %v1570 = vshrl.u32 %v1569, 7
      %v1571 = vsub.s32 0, %v1570
      %v1572 = vrot.slane %v1567, %v1571
      %1574 = vmatprep.subr.mxu0 0.0
      %1575 = vmatpush1.msra.mxu0 %v1566
      %1576 = vmatprep.subr.mxu0 0.0
      %1577 = vmatpush1.msra.mxu0 %v1565
      %1578 = vmatprep.subr.mxu0 0.0
      %1579 = vmatpush1.msra.mxu0 %v1564
      %1580 = vmatprep.subr.mxu0 0.0
      %1581 = vmatpush1.msra.mxu0 %v1563
      %1582 = vmatprep.subr.mxu0 0.0
      %1583 = vmatpush1.msra.mxu0 %v1562
      %1584 = vmatprep.subr.mxu0 0.0
      %1585 = vmatpush1.msra.mxu0 %v1561
      %1586 = vmatprep.subr.mxu0 0.0
      %1587 = vmatpush1.msra.mxu0 %v1560
      %1588 = vmatprep.subr.mxu0 0.0
      %1589 = vmatpush1.msra.mxu0 %v1559
      %1590 = vmatprep.subr.mxu0 0.0
      %1591 = vmatpush1.msra.mxu0 %v1558
      %1592 = vmatprep.subr.mxu0 0.0
      %1593 = vmatpush1.msra.mxu0 %v1557
      %1594 = vmatprep.subr.mxu0 0.0
      %1595 = vmatpush1.msra.mxu0 %v1556
      %1596 = vmatprep.subr.mxu0 0.0
      %1597 = vmatpush1.msra.mxu0 %v1555
      %1598 = vmatprep.subr.mxu0 0.0
      %1599 = vmatpush1.msra.mxu0 %v1554
      %1600 = vmatprep.subr.mxu0 0.0
      %1601 = vmatpush1.msra.mxu0 %v1553
      %1602 = vmatprep.subr.mxu0 0.0
      %1603 = vmatpush1.msra.mxu0 %v1552
      %1604 = vmatprep.subr.mxu0 0.0
      %1605 = vmatpush1.msra.mxu0 %v1551
      %1606 = vmatprep.subr.mxu0 0.0
      %1607 = vmatpush2.msra.mxu0 0.0
      %1608 = vmatprep.subr.mxu0 0.0
      %1609 = vmatpush2.msra.mxu0 0.0
      %1610 = vmatprep.subr.mxu0 0.0
      %1611 = vmatpush2.msra.mxu0 0.0
      %1612 = vmatprep.subr.mxu0 0.0
      %1613 = vmatpush2.msra.mxu0 0.0
      %1614 = vmatprep.subr.mxu0 0.0
      %1615 = vmatpush2.msra.mxu0 0.0
      %1616 = vmatprep.subr.mxu0 0.0
      %1617 = vmatpush2.msra.mxu0 0.0
      %1618 = vmatprep.subr.mxu0 0.0
      %1619 = vmatpush2.msra.mxu0 0.0
      %1620 = vmatprep.subr.mxu0 0.0
      %1621 = vmatpush2.msra.mxu0 0.0
      %1622 = vmatprep.subr.mxu0 0.0
      %1623 = vmatpush2.msra.mxu0 0.0
      %1624 = vmatprep.subr.mxu0 0.0
      %1625 = vmatpush2.msra.mxu0 0.0
      %1626 = vmatprep.subr.mxu0 0.0
      %1627 = vmatpush2.msra.mxu0 0.0
      %1628 = vmatprep.subr.mxu0 0.0
      %1629 = vmatpush2.msra.mxu0 0.0
      %1630 = vmatprep.subr.mxu0 0.0
      %1631 = vmatpush2.msra.mxu0 0.0
      %1632 = vmatprep.subr.mxu0 0.0
      %1633 = vmatpush2.msra.mxu0 0.0
      %1634 = vmatprep.subr.mxu0 0.0
      %1635 = vmatpush2.msra.mxu0 0.0
      %1636 = vmatprep.subr.mxu0 0.0
      %1637 = vmatpush2.msra.mxu0 0.0
      %1638 = vmatprep.mubr.f32.mxu0 0.0
      %1639 = vmatmul.mubr.f32.gmra.mxu0 %v1519
      %v1640 = vpop.f32.mrf.mxu0
      %v1641 = vadd.f32 %v1572, %v1640
      %v1642 = vpop.f32.mrf.mxu0
      %1643 = vmatprep.mubr.f32.mxu0 0.0
      %1644 = vmatmul.mubr.f32.gmra.mxu0 %v1520
      %v1645 = vpop.f32.mrf.mxu0
      %v1646 = vadd.f32 %v1572, %v1645
      %v1647 = vpop.f32.mrf.mxu0
      %1648 = vmatprep.mubr.f32.mxu0 0.0
      %1649 = vmatmul.mubr.f32.gmra.mxu0 %v1521
      %v1650 = vpop.f32.mrf.mxu0
      %v1651 = vadd.f32 %v1572, %v1650
      %v1652 = vpop.f32.mrf.mxu0
      %1653 = vmatprep.mubr.f32.mxu0 0.0
      %1654 = vmatmul.mubr.f32.gmra.mxu0 %v1522
      %v1655 = vpop.f32.mrf.mxu0
      %v1656 = vadd.f32 %v1572, %v1655
      %v1657 = vpop.f32.mrf.mxu0
      %1658 = vmatprep.mubr.f32.mxu0 0.0
      %1659 = vmatmul.mubr.f32.gmra.mxu0 %v1523
      %v1660 = vpop.f32.mrf.mxu0
      %v1661 = vadd.f32 %v1572, %v1660
      %v1662 = vpop.f32.mrf.mxu0
      %1663 = vmatprep.mubr.f32.mxu0 0.0
      %1664 = vmatmul.mubr.f32.gmra.mxu0 %v1524
      %v1665 = vpop.f32.mrf.mxu0
      %v1666 = vadd.f32 %v1572, %v1665
      %v1667 = vpop.f32.mrf.mxu0
      %1668 = vmatprep.mubr.f32.mxu0 0.0
      %1669 = vmatmul.mubr.f32.gmra.mxu0 %v1525
      %v1670 = vpop.f32.mrf.mxu0
      %v1671 = vadd.f32 %v1572, %v1670
      %v1672 = vpop.f32.mrf.mxu0
      %1673 = vmatprep.mubr.f32.mxu0 0.0
      %1674 = vmatmul.mubr.f32.gmra.mxu0 %v1526
      %v1675 = vpop.f32.mrf.mxu0
      %v1676 = vadd.f32 %v1572, %v1675
      %v1677 = vpop.f32.mrf.mxu0
      %1678 = vmatprep.mubr.f32.mxu0 0.0
      %1679 = vmatmul.mubr.f32.gmra.mxu0 %v1527
      %v1680 = vpop.f32.mrf.mxu0
      %v1681 = vadd.f32 %v1572, %v1680
      %v1682 = vpop.f32.mrf.mxu0
      %1683 = vmatprep.mubr.f32.mxu0 0.0
      %1684 = vmatmul.mubr.f32.gmra.mxu0 %v1528
      %v1685 = vpop.f32.mrf.mxu0
      %v1686 = vadd.f32 %v1572, %v1685
      %v1687 = vpop.f32.mrf.mxu0
      %1688 = vmatprep.mubr.f32.mxu0 0.0
      %1689 = vmatmul.mubr.f32.gmra.mxu0 %v1529
      %v1690 = vpop.f32.mrf.mxu0
      %v1691 = vadd.f32 %v1572, %v1690
      %v1692 = vpop.f32.mrf.mxu0
      %1693 = vmatprep.mubr.f32.mxu0 0.0
      %1694 = vmatmul.mubr.f32.gmra.mxu0 %v1530
      %v1695 = vpop.f32.mrf.mxu0
      %v1696 = vadd.f32 %v1572, %v1695
      %v1697 = vpop.f32.mrf.mxu0
      %1698 = vmatprep.mubr.f32.mxu0 0.0
      %1699 = vmatmul.mubr.f32.gmra.mxu0 %v1531
      %v1700 = vpop.f32.mrf.mxu0
      %v1701 = vadd.f32 %v1572, %v1700
      %v1702 = vpop.f32.mrf.mxu0
      %1703 = vmatprep.mubr.f32.mxu0 0.0
      %1704 = vmatmul.mubr.f32.gmra.mxu0 %v1532
      %v1705 = vpop.f32.mrf.mxu0
      %v1706 = vadd.f32 %v1572, %v1705
      %v1707 = vpop.f32.mrf.mxu0
      %1708 = vmatprep.mubr.f32.mxu0 0.0
      %1709 = vmatmul.mubr.f32.gmra.mxu0 %v1533
      %v1710 = vpop.f32.mrf.mxu0
      %v1711 = vadd.f32 %v1572, %v1710
      %v1712 = vpop.f32.mrf.mxu0
      %1713 = vmatprep.mubr.f32.mxu0 0.0
      %1714 = vmatmul.mubr.f32.gmra.mxu0 %v1534
      %v1715 = vpop.f32.mrf.mxu0
      %v1716 = vadd.f32 %v1572, %v1715
      %v1717 = vpop.f32.mrf.mxu0
      %1718 = vmatprep.mubr.f32.mxu0 0.0
      %1719 = vmatmul.mubr.f32.gmra.mxu0 %v1535
      %v1720 = vpop.f32.mrf.mxu0
      %v1721 = vadd.f32 %v1572, %v1720
      %v1722 = vpop.f32.mrf.mxu0
      %1723 = vmatprep.mubr.f32.mxu0 0.0
      %1724 = vmatmul.mubr.f32.gmra.mxu0 %v1536
      %v1725 = vpop.f32.mrf.mxu0
      %v1726 = vadd.f32 %v1572, %v1725
      %v1727 = vpop.f32.mrf.mxu0
      %1728 = vmatprep.mubr.f32.mxu0 0.0
      %1729 = vmatmul.mubr.f32.gmra.mxu0 %v1537
      %v1730 = vpop.f32.mrf.mxu0
      %v1731 = vadd.f32 %v1572, %v1730
      %v1732 = vpop.f32.mrf.mxu0
      %1733 = vmatprep.mubr.f32.mxu0 0.0
      %1734 = vmatmul.mubr.f32.gmra.mxu0 %v1538
      %v1735 = vpop.f32.mrf.mxu0
      %v1736 = vadd.f32 %v1572, %v1735
      %v1737 = vpop.f32.mrf.mxu0
      %1738 = vmatprep.mubr.f32.mxu0 0.0
      %1739 = vmatmul.mubr.f32.gmra.mxu0 %v1539
      %v1740 = vpop.f32.mrf.mxu0
      %v1741 = vadd.f32 %v1572, %v1740
      %v1742 = vpop.f32.mrf.mxu0
      %1743 = vmatprep.mubr.f32.mxu0 0.0
      %1744 = vmatmul.mubr.f32.gmra.mxu0 %v1540
      %v1745 = vpop.f32.mrf.mxu0
      %v1746 = vadd.f32 %v1572, %v1745
      %v1747 = vpop.f32.mrf.mxu0
      %1748 = vmatprep.mubr.f32.mxu0 0.0
      %1749 = vmatmul.mubr.f32.gmra.mxu0 %v1541
      %v1750 = vpop.f32.mrf.mxu0
      %v1751 = vadd.f32 %v1572, %v1750
      %v1752 = vpop.f32.mrf.mxu0
      %1753 = vmatprep.mubr.f32.mxu0 0.0
      %1754 = vmatmul.mubr.f32.gmra.mxu0 %v1542
      %v1755 = vpop.f32.mrf.mxu0
      %v1756 = vadd.f32 %v1572, %v1755
      %v1757 = vpop.f32.mrf.mxu0
      %1758 = vmatprep.mubr.f32.mxu0 0.0
      %1759 = vmatmul.mubr.f32.gmra.mxu0 %v1543
      %v1760 = vpop.f32.mrf.mxu0
      %v1761 = vadd.f32 %v1572, %v1760
      %v1762 = vpop.f32.mrf.mxu0
      %1763 = vmatprep.mubr.f32.mxu0 0.0
      %1764 = vmatmul.mubr.f32.gmra.mxu0 %v1544
      %v1765 = vpop.f32.mrf.mxu0
      %v1766 = vadd.f32 %v1572, %v1765
      %v1767 = vpop.f32.mrf.mxu0
      %1768 = vmatprep.mubr.f32.mxu0 0.0
      %1769 = vmatmul.mubr.f32.gmra.mxu0 %v1545
      %v1770 = vpop.f32.mrf.mxu0
      %v1771 = vadd.f32 %v1572, %v1770
      %v1772 = vpop.f32.mrf.mxu0
      %1773 = vmatprep.mubr.f32.mxu0 0.0
      %1774 = vmatmul.mubr.f32.gmra.mxu0 %v1546
      %v1775 = vpop.f32.mrf.mxu0
      %v1776 = vadd.f32 %v1572, %v1775
      %v1777 = vpop.f32.mrf.mxu0
      %1778 = vmatprep.mubr.f32.mxu0 0.0
      %1779 = vmatmul.mubr.f32.gmra.mxu0 %v1547
      %v1780 = vpop.f32.mrf.mxu0
      %v1781 = vadd.f32 %v1572, %v1780
      %v1782 = vpop.f32.mrf.mxu0
      %1783 = vmatprep.mubr.f32.mxu0 0.0
      %1784 = vmatmul.mubr.f32.gmra.mxu0 %v1548
      %v1785 = vpop.f32.mrf.mxu0
      %v1786 = vadd.f32 %v1572, %v1785
      %v1787 = vpop.f32.mrf.mxu0
      %1788 = vmatprep.mubr.f32.mxu0 0.0
      %1789 = vmatmul.mubr.f32.gmra.mxu0 %v1549
      %v1790 = vpop.f32.mrf.mxu0
      %v1791 = vadd.f32 %v1572, %v1790
      %v1792 = vpop.f32.mrf.mxu0
      %1793 = vmatprep.mubr.f32.mxu0 0.0
      %1794 = vmatmul.mubr.f32.gmra.mxu0 %v1550
      %v1795 = vpop.f32.mrf.mxu0
      %v1796 = vadd.f32 %v1572, %v1795
      %v1797 = vpop.f32.mrf.mxu0
      %1798 = vdwg.mxu0
      %1799 = vst.msk [vmem:[%s194] sm:$0xff] %vm1287, %v1641
      %1800 = vst.msk [vmem:[%s194 + $0x8] sm:$0xff] %vm1287, %v1646
      %1801 = vst.msk [vmem:[%s194 + $0x10] sm:$0xff] %vm1287, %v1651
      %1802 = vst.msk [vmem:[%s194 + $0x18] sm:$0xff] %vm1287, %v1656
      %1803 = vst.msk [vmem:[%s194 + $0x20] sm:$0xff] %vm1287, %v1661
      %1804 = vst.msk [vmem:[%s194 + $0x28] sm:$0xff] %vm1287, %v1666
      %1805 = vst.msk [vmem:[%s194 + $0x30] sm:$0xff] %vm1287, %v1671
      %1806 = vst.msk [vmem:[%s194 + $0x38] sm:$0xff] %vm1287, %v1676
      %1807 = vst.msk [vmem:[%s194 + $0x40] sm:$0xff] %vm1287, %v1681
      %1808 = vst.msk [vmem:[%s194 + $0x48] sm:$0xff] %vm1287, %v1686
      %1809 = vst.msk [vmem:[%s194 + $0x50] sm:$0xff] %vm1287, %v1691
      %1810 = vst.msk [vmem:[%s194 + $0x58] sm:$0xff] %vm1287, %v1696
      %1811 = vst.msk [vmem:[%s194 + $0x60] sm:$0xff] %vm1287, %v1701
      %1812 = vst.msk [vmem:[%s194 + $0x68] sm:$0xff] %vm1287, %v1706
      %1813 = vst.msk [vmem:[%s194 + $0x70] sm:$0xff] %vm1287, %v1711
      %1814 = vst.msk [vmem:[%s194 + $0x78] sm:$0xff] %vm1287, %v1716
      %1815 = vst.msk [vmem:[%s194 + $0x80] sm:$0xff] %vm1287, %v1721
      %1816 = vst.msk [vmem:[%s194 + $0x88] sm:$0xff] %vm1287, %v1726
      %1817 = vst.msk [vmem:[%s194 + $0x90] sm:$0xff] %vm1287, %v1731
      %1818 = vst.msk [vmem:[%s194 + $0x98] sm:$0xff] %vm1287, %v1736
      %1819 = vst.msk [vmem:[%s194 + $0xa0] sm:$0xff] %vm1287, %v1741
      %1820 = vst.msk [vmem:[%s194 + $0xa8] sm:$0xff] %vm1287, %v1746
      %1821 = vst.msk [vmem:[%s194 + $0xb0] sm:$0xff] %vm1287, %v1751
      %1822 = vst.msk [vmem:[%s194 + $0xb8] sm:$0xff] %vm1287, %v1756
      %1823 = vst.msk [vmem:[%s194 + $0xc0] sm:$0xff] %vm1287, %v1761
      %1824 = vst.msk [vmem:[%s194 + $0xc8] sm:$0xff] %vm1287, %v1766
      %1825 = vst.msk [vmem:[%s194 + $0xd0] sm:$0xff] %vm1287, %v1771
      %1826 = vst.msk [vmem:[%s194 + $0xd8] sm:$0xff] %vm1287, %v1776
      %1827 = vst.msk [vmem:[%s194 + $0xe0] sm:$0xff] %vm1287, %v1781
      %1828 = vst.msk [vmem:[%s194 + $0xe8] sm:$0xff] %vm1287, %v1786
      %1829 = vst.msk [vmem:[%s194 + $0xf0] sm:$0xff] %vm1287, %v1791
      %1830 = vst.msk [vmem:[%s194 + $0xf8] sm:$0xff] %vm1287, %v1796
      %s1831 = smul.u32 16, %s19
      %p1832 = scmp.lt.s32.totalorder %s18, 1
      %s1833 = scalar_select %p1832, %s18, 1
      %p1834 = scmp.lt.s32.totalorder %s1831, 15
      %s1835 = scalar_select %p1834, %s1831, 15
      %s1836 = smul.addr %s1835, 2
      %s1837 = smul.addr %s1833, 32
      %s1838 = sadd.s32 %s1836, %s1837
      %s1839 = smul.addr %s1838, 8
      %s1840 = scalar_lea.vmem %s3, %s1839
      // Predicated region
      $region33: #{tpu_custom_call.1} parent=31 // pred_check
        %p1841 = pneg %p114
      $region34: #{tpu_custom_call.1} parent=31 // pred_check_branch
        %1843 = sbr.rel (%p1841) target = $region36
      $region35: #{tpu_custom_call.1} parent=31 // pred_region
        %s1844 = smul.u32 16, %s19
      $region36: #{tpu_custom_call.1} parent=31 // pred_fallthru
        _
    $region32: #{tpu_custom_call.1} parent=5 // pred_fallthru
      _
    %p1845 = scmp.le.s32.totalorder 2, %s9
    // Predicated region
    $region37: #{tpu_custom_call.1} parent=5 // pred_check
      %p1846 = pneg %p1845
    $region38: #{tpu_custom_call.1} parent=5 // pred_check_branch
      %1848 = sbr.rel (%p1846) target = $region40
    $region39: #{tpu_custom_call.1} parent=5 // pred_region
      %s1849 = ssub.s32 %s9, 2
      // Predicated region
      $region41: #{tpu_custom_call.1} parent=39 // pred_check
        %p1850 = pneg %p120
      $region42: #{tpu_custom_call.1} parent=39 // pred_check_branch
        %1852 = sbr.rel (%p1850) target = $region44
      $region43: #{tpu_custom_call.1} parent=39 // pred_region
        %s1853 = smul.u32 16, %s21
        %p1854 = scmp.lt.s32.totalorder %s20, 1
        %s1855 = scalar_select %p1854, %s20, 1
        %p1856 = scmp.lt.s32.totalorder %s1853, 15
        %s1857 = scalar_select %p1856, %s1853, 15
        %s1858 = smul.addr %s1857, 2
        %s1859 = smul.addr %s1855, 32
        %s1860 = sadd.s32 %s1858, %s1859
        %s1861 = smul.addr %s1860, 8
        %s1862 = scalar_lea.vmem %s3, %s1861
      $region44: #{tpu_custom_call.1} parent=39 // pred_fallthru
        _
    $region40: #{tpu_custom_call.1} parent=5 // pred_fallthru
      _
  $region6: #{tpu_custom_call.1} parent=0 // loop_footer
    %s13 = sadd.s32 1, %s9
  $region7: #{tpu_custom_call.1} parent=0 // loop_footer_branch
    %8 = sbr.rel target = $region3
  $region8: #{tpu_custom_call.1} parent=0 // loop_exit
    _

</llo_original>
